<compile_context>
chip_gen: v7x
topology: tpu7x:2x2x1
jax: 0.10.0
libtpu: 0.0.40
codegen_flags: <defaults>
</compile_context>

<pallas_src>
import functools
import math

import jax
import jax.numpy as jnp
from jax.experimental import pallas as pl
from jax.experimental.pallas import tpu as pltpu

# MXU operand dtype (bf16 operands + f32 accumulation). Elementwise math stays f32.
MM_DT = jnp.bfloat16


def _mm(a, b):
  """MXU matmul with bf16 operands and f32 accumulation."""
  return jnp.dot(a.astype(MM_DT), b.astype(MM_DT),
                 preferred_element_type=jnp.float32)


def _const_spec(shape):
  """Whole-array block, identical at every grid step (stays VMEM-resident)."""
  n = len(shape)
  return pl.BlockSpec(shape, lambda *_, n=n: (0,) * n)


def _layernorm(x, gamma, beta, eps=1e-5):
  mean = jnp.mean(x, axis=-1, keepdims=True)
  var = jnp.mean((x - mean) ** 2, axis=-1, keepdims=True)
  return (x - mean) * jax.lax.rsqrt(var + eps) * gamma + beta


# ----------------------------------------------------------------------------
# fused LSTM layer: one grid step per batch element, recurrence in-kernel
# ----------------------------------------------------------------------------
def _lstm_kernel(x_ref, wih_ref, whh_ref, b_ref, o_ref, *, hidden, t_len):
  """x @ W_ih is hoisted into one matmul over all timesteps; the serial loop
  only does h_{t-1} @ W_hh. The rnn-stack epilogue relu(cat([h, x], -1)) is
  fused into the output write so LSTM hidden states never hit HBM."""
  H = hidden
  x = x_ref[0]                                              # (T, Din) f32
  gates_in = _mm(x, wih_ref[...]) + b_ref[...]              # (T, 4H): one MXU matmul
  whh = whh_ref[...]                                        # (H, 4H) bf16
  h = jnp.zeros((1, H), jnp.float32)
  c = jnp.zeros((1, H), jnp.float32)
  hs = []
  # Static unroll over time (small T).  TODO(synk): for long sequences switch
  # to lax.fori_loop with a VMEM gates scratch to bound code size.
  for t in range(t_len):
    g = gates_in[t:t + 1, :] + jnp.dot(h.astype(MM_DT), whh,
                                       preferred_element_type=jnp.float32)
    i_g = jax.nn.sigmoid(g[:, 0 * H:1 * H])                 # PyTorch gate order i,f,g,o
    f_g = jax.nn.sigmoid(g[:, 1 * H:2 * H])
    g_g = jnp.tanh(g[:, 2 * H:3 * H])
    o_g = jax.nn.sigmoid(g[:, 3 * H:4 * H])
    c = f_g * c + i_g * g_g
    h = o_g * jnp.tanh(c)
    hs.append(h)
  h_all = jnp.concatenate(hs, axis=0)                       # (T, H)
  o_ref[:, :, 0:H] = jnp.maximum(h_all, 0.0)[None]          # relu(h) part
  o_ref[:, :, H:] = jnp.maximum(x, 0.0)[None]               # relu(x) part


def lstm_layer(x, w_ih, w_hh, b_ih, b_hh):
  """x: (B, T, Din) -> relu(cat([lstm(x), x], -1)): (B, T, H + Din)."""
  B, T, Din = x.shape
  H = w_hh.shape[0]
  bias = (b_ih + b_hh).reshape(1, -1)            # nn.LSTM has separate biases
  return pl.pallas_call(
      functools.partial(_lstm_kernel, hidden=H, t_len=T),
      out_shape=jax.ShapeDtypeStruct((B, T, H + Din), jnp.float32),
      grid=(B,),                                 # size-B parallel axis (v7x: 2 TCs)
      in_specs=[pl.BlockSpec((1, T, Din), lambda b: (b, 0, 0)),
                _const_spec((Din, 4 * H)),
                _const_spec((H, 4 * H)),
                _const_spec((1, 4 * H))],
      out_specs=pl.BlockSpec((1, T, H + Din), lambda b: (b, 0, 0)),
      compiler_params=pltpu.CompilerParams(dimension_semantics=("parallel",)),
  )(x, w_ih.astype(MM_DT), w_hh.astype(MM_DT), bias)


# ----------------------------------------------------------------------------
# row-tiled fused linear (+bias, +optional ReLU) and fused fc head
# ----------------------------------------------------------------------------
def _linear_kernel(x_ref, w_ref, b_ref, o_ref, *, activation):
  y = _mm(x_ref[...], w_ref[...]) + b_ref[...]
  if activation == "relu":
    y = jnp.maximum(y, 0.0)
  o_ref[...] = y.astype(o_ref.dtype)


def linear(x, w, b, activation=None, tile_m=256):
  lead = x.shape[:-1]
  M = int(math.prod(lead))
  Din, Dout = w.shape
  tm = M if M <= tile_m else tile_m              # tile rows when B*T grows
  out = pl.pallas_call(
      functools.partial(_linear_kernel, activation=activation),
      out_shape=jax.ShapeDtypeStruct((M, Dout), jnp.float32),
      grid=(pl.cdiv(M, tm),),
      in_specs=[pl.BlockSpec((tm, Din), lambda i: (i, 0)),
                _const_spec((Din, Dout)), _const_spec((1, Dout))],
      out_specs=pl.BlockSpec((tm, Dout), lambda i: (i, 0)),
      compiler_params=pltpu.CompilerParams(dimension_semantics=("parallel",)),
  )(x.reshape(M, Din), w.astype(MM_DT), b.reshape(1, -1))
  return out.reshape(lead + (Dout,))


def _head_kernel(x_ref, w1_ref, b1_ref, w2_ref, b2_ref, o_ref):
  h = _mm(x_ref[...], w1_ref[...]) + b1_ref[...]
  h = jnp.maximum(h, 0.0)
  # TODO(synk): LinBnReLu's exact definition is not in the spec; assumed
  # Linear->ReLU for the hidden layer and NO activation on the final logits
  # (is_bn=False; dropout is identity at inference).
  o_ref[...] = (_mm(h, w2_ref[...]) + b2_ref[...]).astype(o_ref.dtype)


def head(x, p1, p2, tile_m=256):
  """Fused classification head: fc1 -> ReLU -> fc2 in a single pallas_call."""
  lead = x.shape[:-1]
  D = x.shape[-1]
  M = int(math.prod(lead))
  Dh = p1["w"].shape[1]
  Do = p2["w"].shape[1]
  tm = M if M <= tile_m else tile_m
  out = pl.pallas_call(
      _head_kernel,
      out_shape=jax.ShapeDtypeStruct((M, Do), jnp.float32),
      grid=(pl.cdiv(M, tm),),
      in_specs=[pl.BlockSpec((tm, D), lambda i: (i, 0)),
                _const_spec((D, Dh)), _const_spec((1, Dh)),
                _const_spec((Dh, Do)), _const_spec((1, Do))],
      out_specs=pl.BlockSpec((tm, Do), lambda i: (i, 0)),
      compiler_params=pltpu.CompilerParams(dimension_semantics=("parallel",)),
  )(x.reshape(M, D), p1["w"].astype(MM_DT), p1["b"].reshape(1, -1),
    p2["w"].astype(MM_DT), p2["b"].reshape(1, -1))
  return out.reshape(lead + (Do,))


# ----------------------------------------------------------------------------
# fused conformer block: FFN1 + MHSA + ConvModule + FFN2 + final LN, ONE kernel
# ----------------------------------------------------------------------------
def _ffn_body(x, g, be, w1, b1, w2, b2):
  h = _layernorm(x, g, be)
  h = _mm(h, w1) + b1
  h = h * jax.nn.sigmoid(h)                                 # swish
  return _mm(h, w2) + b2


def _mhsa_body(x, g, be, wq, bq, wk, bk, wv, bv, wo, bo, num_heads):
  h = _layernorm(x, g, be)
  q = _mm(h, wq) + bq
  k = _mm(h, wk) + bk
  v = _mm(h, wv) + bv
  D = x.shape[-1]
  hd = D // num_heads
  scale = 1.0 / math.sqrt(hd)
  y = jnp.zeros_like(x)
  # Output projection distributed per head -> no lane-level concat of head
  # chunks.  TODO(synk): for larger num_heads / T switch to one head-batched
  # dot_general over a (num_heads, T, hd) layout.
  for hh in range(num_heads):
    sl = slice(hh * hd, (hh + 1) * hd)
    qh, kh, vh = q[:, sl], k[:, sl], v[:, sl]
    s = jax.lax.dot_general(qh.astype(MM_DT), kh.astype(MM_DT),
                            (((1,), (1,)), ((), ())),
                            preferred_element_type=jnp.float32) * scale
    s = s - jnp.max(s, axis=-1, keepdims=True)
    p = jnp.exp(s)
    p = p * pl.reciprocal(jnp.sum(p, axis=-1, keepdims=True), approx=True)
    ctx = _mm(p, vh)                                        # (T, hd)
    y = y + _mm(ctx, wo[sl, :])                             # (T, D)
  return y + bo


def _shift_time(h, off):
  """s[t] = h[t + off] for 0 <= t + off < T, zero outside ('same' padding).
  Static sublane slice + zero block: replaces the old (K,T,T) shift-matrix
  matmuls, so no extra MXU work and no resident shift tensor."""
  if off == 0:
    return h
  z = jnp.zeros((abs(off), h.shape[1]), h.dtype)
  if off > 0:
    return jnp.concatenate([h[off:, :], z], axis=0)
  return jnp.concatenate([z, h[:off, :]], axis=0)


def _conv_body(x, g, be, w1, b1, wdw, bdw, bn_s, bn_t, w2, b2, ksize):
  D = x.shape[-1]
  h = _layernorm(x, g, be)
  h = _mm(h, w1) + b1                                       # pointwise D -> 2D
  h = h[:, :D] * jax.nn.sigmoid(h[:, D:])                   # GLU
  pad = (ksize - 1) // 2
  acc = jnp.zeros_like(h)
  for j in range(ksize):                                    # depthwise conv (VPU)
    acc = acc + _shift_time(h, j - pad) * wdw[j:j + 1, :]
  acc = acc + bdw
  acc = acc * bn_s + bn_t               # BatchNorm1d (eval), running stats folded
  acc = acc * jax.nn.sigmoid(acc)                           # swish
  return _mm(acc, w2) + b2                                  # pointwise D -> D


def _conformer_kernel(*refs, num_heads, ksize):
  (x_ref,
   f1_g, f1_b, f1_w1, f1_b1, f1_w2, f1_b2,
   a_g, a_b, wq, bq, wk, bk, wv, bv, wo, bo,
   c_g, c_b, c_w1, c_b1, c_wdw, c_bdw, c_bns, c_bnt, c_w2, c_b2,
   f2_g, f2_b, f2_w1, f2_b1, f2_w2, f2_b2,
   ln_g, ln_b,
   o_ref) = refs

  x = x_ref[0]                                              # (T, D)
  x = x + 0.5 * _ffn_body(x, f1_g[...], f1_b[...], f1_w1[...], f1_b1[...],
                          f1_w2[...], f1_b2[...])
  x = x + _mhsa_body(x, a_g[...], a_b[...], wq[...], bq[...], wk[...], bk[...],
                     wv[...], bv[...], wo[...], bo[...], num_heads)
  x = x + _conv_body(x, c_g[...], c_b[...], c_w1[...], c_b1[...], c_wdw[...],
                     c_bdw[...], c_bns[...], c_bnt[...], c_w2[...], c_b2[...],
                     ksize)
  x = x + 0.5 * _ffn_body(x, f2_g[...], f2_b[...], f2_w1[...], f2_b1[...],
                          f2_w2[...], f2_b2[...])
  o_ref[0] = _layernorm(x, ln_g[...], ln_b[...]).astype(o_ref.dtype)


def conformer_block(x, p, num_heads, ksize):
  B, T, D = x.shape
  f1, at, cv, f2 = p["ffn1"], p["mhsa"], p["conv"], p["ffn2"]
  # Fold BatchNorm1d running statistics (eval mode) into scale/shift.
  bn_s = cv["bn_g"] * jax.lax.rsqrt(cv["bn_rv"] + 1e-5)
  bn_t = cv["bn_b"] - cv["bn_rm"] * bn_s

  mat = lambda w: w.astype(MM_DT)                # MXU operands in bf16
  vec = lambda v: v.reshape(1, -1)               # VPU operands stay f32
  flat = [
      vec(f1["ln_g"]), vec(f1["ln_b"]), mat(f1["w1"]), vec(f1["b1"]),
      mat(f1["w2"]), vec(f1["b2"]),
      vec(at["ln_g"]), vec(at["ln_b"]),
      mat(at["wq"]), vec(at["bq"]), mat(at["wk"]), vec(at["bk"]),
      mat(at["wv"]), vec(at["bv"]), mat(at["wo"]), vec(at["bo"]),
      vec(cv["ln_g"]), vec(cv["ln_b"]), mat(cv["w1"]), vec(cv["b1"]),
      cv["wdw"], vec(cv["bdw"]), vec(bn_s), vec(bn_t),
      mat(cv["w2"]), vec(cv["b2"]),
      vec(f2["ln_g"]), vec(f2["ln_b"]), mat(f2["w1"]), vec(f2["b1"]),
      mat(f2["w2"]), vec(f2["b2"]),
      vec(p["ln_g"]), vec(p["ln_b"]),
  ]
  # NOTE: at these shapes everything fits the default scoped VMEM on every
  # generation; when scaling T/D re-derive block sizes against v7x's 64 MiB
  # physical VMEM and set pltpu.CompilerParams(vmem_limit_bytes=...) explicitly.
  return pl.pallas_call(
      functools.partial(_conformer_kernel, num_heads=num_heads, ksize=ksize),
      out_shape=jax.ShapeDtypeStruct((B, T, D), jnp.float32),
      grid=(B,),                                 # size-B parallel axis (v7x: 2 TCs)
      in_specs=([pl.BlockSpec((1, T, D), lambda b: (b, 0, 0))]
                + [_const_spec(a.shape) for a in flat]),
      out_specs=pl.BlockSpec((1, T, D), lambda b: (b, 0, 0)),
      compiler_params=pltpu.CompilerParams(dimension_semantics=("parallel",)),
  )(x, *flat)


# ----------------------------------------------------------------------------
# full model forward
# ----------------------------------------------------------------------------
def model_forward(params, cfg, x_cat, x_num):
  # embedding lookup + concat (gather/concat are XLA glue; order matches
  # torch.cat([x_num, x_cat], -1))
  embs = [jnp.take(tbl, x_cat[:, :, i], axis=0)
          for i, tbl in enumerate(params["emb"])]
  x = jnp.concatenate([x_num] + embs, axis=-1)

  # rnn stack: each layer's kernel emits relu(cat([lstm(x), x], -1)) directly
  for lw in params["lstm"]:
    x = lstm_layer(x, lw["w_ih"], lw["w_hh"], lw["b_ih"], lw["b_hh"])

  # projection to d_model (+ReLU)
  x = linear(x, params["proj"]["w"], params["proj"]["b"], activation="relu")

  # conformer blocks: ONE fused pallas_call per block
  for cp in params["conformer"]:
    x = conformer_block(x, cp, cfg["num_heads"], cfg["conv_kernel"])

  # classification head: fused fc1 -> ReLU -> fc2 (logits, no final ReLU)
  return head(x, params["fc1"], params["fc2"])


# ----------------------------------------------------------------------------
# deterministic parameter init
# ----------------------------------------------------------------------------
def init_params(key, cfg):
  kit = iter(jax.random.split(key, 256))

  def nrm(shape, scale=0.1):
    return (scale * jax.random.normal(next(kit), shape)).astype(jnp.float32)

  D, Dff, K = cfg["d_model"], cfg["ffn_dim"], cfg["conv_kernel"]
  ones = lambda n: jnp.ones((n,), jnp.float32)
  zeros = lambda n: jnp.zeros((n,), jnp.float32)

  params = {}
  params["emb"] = [nrm((v, d)) for v, d in zip(cfg["vocab_sizes"], cfg["emb_dims"])]
  cur = cfg["n_num"] + sum(cfg["emb_dims"])
  params["lstm"] = []
  for _ in range(cfg["n_lstm"]):
    H = cfg["lstm_hidden"]
    params["lstm"].append({"w_ih": nrm((cur, 4 * H)),
                           "w_hh": nrm((H, 4 * H)),
                           "b_ih": nrm((4 * H,)),
                           "b_hh": nrm((4 * H,))})
    cur = cur + H                      # residual concat widens the feature dim
  params["proj"] = {"w": nrm((cur, D)), "b": nrm((D,))}

  def ffn_p():
    return {"ln_g": ones(D), "ln_b": zeros(D),
            "w1": nrm((D, Dff)), "b1": nrm((Dff,)),
            "w2": nrm((Dff, D)), "b2": nrm((D,))}

  params["conformer"] = []
  for _ in range(cfg["n_conformer"]):
    params["conformer"].append({
        "ffn1": ffn_p(),
        "mhsa": {"ln_g": ones(D), "ln_b": zeros(D),
                 "wq": nrm((D, D)), "bq": nrm((D,)),
                 "wk": nrm((D, D)), "bk": nrm((D,)),
                 "wv": nrm((D, D)), "bv": nrm((D,)),
                 "wo": nrm((D, D)), "bo": nrm((D,))},
        "conv": {"ln_g": ones(D), "ln_b": zeros(D),
                 "w1": nrm((D, 2 * D)), "b1": nrm((2 * D,)),
                 "wdw": nrm((K, D)), "bdw": nrm((D,)),
                 "bn_g": ones(D), "bn_b": zeros(D),
                 "bn_rm": zeros(D), "bn_rv": ones(D),
                 "w2": nrm((D, D)), "b2": nrm((D,))},
        "ffn2": ffn_p(),
        "ln_g": ones(D), "ln_b": zeros(D),
    })
  params["fc1"] = {"w": nrm((D, 512)), "b": nrm((512,))}
  params["fc2"] = {"w": nrm((512, cfg["output_dim"])), "b": nrm((cfg["output_dim"],))}
  return params


if __name__ == "__main__":
  cfg = dict(
      vocab_sizes=[7, 5, 9], emb_dims=[4, 4, 4], n_num=4,
      n_lstm=1, lstm_hidden=16,
      d_model=32, ffn_dim=64, num_heads=4, conv_kernel=3, n_conformer=1,
      output_dim=8,
  )
  B, T = 2, 8

  root = jax.random.PRNGKey(0)
  kp, kc, kn = jax.random.split(root, 3)
  params = init_params(kp, cfg)

  cat_keys = jax.random.split(kc, len(cfg["vocab_sizes"]))
  x_cat = jnp.stack(
      [jax.random.randint(cat_keys[i], (B, T), 0, cfg["vocab_sizes"][i],
                          dtype=jnp.int32)
       for i in range(len(cfg["vocab_sizes"]))], axis=-1)      # (B, T, 3)
  x_num = jax.random.normal(kn, (B, T, cfg["n_num"]), dtype=jnp.float32)

  out = model_forward(params, cfg, x_cat, x_num)
  out = jax.block_until_ready(out)
  assert out.shape == (B, T, cfg["output_dim"]), out.shape
  print("KERNEL_OK")
</pallas_src>

<mosaic_0001>
module attributes {stable_mosaic.version = 11 : i64} {
  func.func @_lstm_kernel(%arg0: i32, %arg1: memref<1x8x16xf32, #tpu.memory_space<vmem>>, %arg2: memref<16x64xbf16, #tpu.memory_space<vmem>>, %arg3: memref<16x64xbf16, #tpu.memory_space<vmem>>, %arg4: memref<1x64xf32, #tpu.memory_space<vmem>>, %arg5: memref<1x8x32xf32, #tpu.memory_space<vmem>>) attributes {dimension_semantics = [#tpu.dimension_semantics<parallel>], iteration_bounds = array<i64: 2>, scalar_prefetch = 0 : i64, scratch_operands = 0 : i64, tpu.core_type = #tpu.core_type<tc>, window_params = [{transform_indices = @transform_0, window_bounds = array<i64: 1, 8, 16>}, {pipeline_mode = #tpu.pipeline_mode<synchronous>, transform_indices = @transform_1, window_bounds = array<i64: 16, 64>}, {pipeline_mode = #tpu.pipeline_mode<synchronous>, transform_indices = @transform_2, window_bounds = array<i64: 16, 64>}, {pipeline_mode = #tpu.pipeline_mode<synchronous>, transform_indices = @transform_3, window_bounds = array<i64: 1, 64>}, {transform_indices = @transform_4, window_bounds = array<i64: 1, 8, 32>}]} {
    %c0 = arith.constant 0 : index
    %c0_0 = arith.constant 0 : index
    %c0_1 = arith.constant 0 : index
    %0 = vector.load %arg1[%c0, %c0_0, %c0_1] : memref<1x8x16xf32, #tpu.memory_space<vmem>>, vector<1x8x16xf32>
    %1 = vector.shape_cast %0 : vector<1x8x16xf32> to vector<8x16xf32>
    %c0_2 = arith.constant 0 : index
    %c0_3 = arith.constant 0 : index
    %2 = vector.load %arg2[%c0_2, %c0_3] : memref<16x64xbf16, #tpu.memory_space<vmem>>, vector<16x64xbf16>
    %3 = arith.truncf %1 : vector<8x16xf32> to vector<8x16xbf16>
    %cst = arith.constant dense<0.000000e+00> : vector<8x64xf32>
    %4 = tpu.matmul %3, %2, %cst {dimension_numbers = #tpu.dot_dimension_numbers<[1], [0], [0], [1], [0, 0, 1, 1], [], []>} : vector<8x16xbf16>, vector<16x64xbf16>, vector<8x64xf32> -> vector<8x64xf32>
    %c0_4 = arith.constant 0 : index
    %c0_5 = arith.constant 0 : index
    %5 = vector.load %arg4[%c0_4, %c0_5] : memref<1x64xf32, #tpu.memory_space<vmem>>, vector<1x64xf32>
    %6 = vector.broadcast %5 : vector<1x64xf32> to vector<8x64xf32>
    %7 = arith.addf %4, %6 : vector<8x64xf32>
    %c0_6 = arith.constant 0 : index
    %c0_7 = arith.constant 0 : index
    %8 = vector.load %arg3[%c0_6, %c0_7] : memref<16x64xbf16, #tpu.memory_space<vmem>>, vector<16x64xbf16>
    %cst_8 = arith.constant 0.000000e+00 : f32
    %9 = vector.broadcast %cst_8 : f32 to vector<1x16xf32>
    %cst_9 = arith.constant 0.000000e+00 : f32
    %10 = vector.broadcast %cst_9 : f32 to vector<1x16xf32>
    %11 = vector.extract_strided_slice %7 {offsets = [0, 0], sizes = [1, 64], strides = [1, 1]} : vector<8x64xf32> to vector<1x64xf32>
    %12 = arith.truncf %9 : vector<1x16xf32> to vector<1x16xbf16>
    %cst_10 = arith.constant dense<0.000000e+00> : vector<1x64xf32>
    %13 = tpu.matmul %12, %8, %cst_10 {dimension_numbers = #tpu.dot_dimension_numbers<[1], [0], [0], [1], [0, 0, 1, 1], [], []>} : vector<1x16xbf16>, vector<16x64xbf16>, vector<1x64xf32> -> vector<1x64xf32>
    %14 = arith.addf %11, %13 : vector<1x64xf32>
    %15 = vector.extract_strided_slice %14 {offsets = [0, 0], sizes = [1, 16], strides = [1, 1]} : vector<1x64xf32> to vector<1x16xf32>
    %16 = arith.negf %15 : vector<1x16xf32>
    %17 = math.exp %16 : vector<1x16xf32>
    %cst_11 = arith.constant 1.000000e+00 : f32
    %18 = vector.broadcast %cst_11 : f32 to vector<1x16xf32>
    %19 = arith.addf %18, %17 : vector<1x16xf32>
    %20 = arith.divf %18, %19 : vector<1x16xf32>
    %21 = vector.extract_strided_slice %14 {offsets = [0, 16], sizes = [1, 16], strides = [1, 1]} : vector<1x64xf32> to vector<1x16xf32>
    %22 = arith.negf %21 : vector<1x16xf32>
    %23 = math.exp %22 : vector<1x16xf32>
    %cst_12 = arith.constant 1.000000e+00 : f32
    %24 = vector.broadcast %cst_12 : f32 to vector<1x16xf32>
    %25 = arith.addf %24, %23 : vector<1x16xf32>
    %26 = arith.divf %24, %25 : vector<1x16xf32>
    %27 = vector.extract_strided_slice %14 {offsets = [0, 32], sizes = [1, 16], strides = [1, 1]} : vector<1x64xf32> to vector<1x16xf32>
    %28 = math.tanh %27 : vector<1x16xf32>
    %29 = vector.extract_strided_slice %14 {offsets = [0, 48], sizes = [1, 16], strides = [1, 1]} : vector<1x64xf32> to vector<1x16xf32>
    %30 = arith.negf %29 : vector<1x16xf32>
    %31 = math.exp %30 : vector<1x16xf32>
    %cst_13 = arith.constant 1.000000e+00 : f32
    %32 = vector.broadcast %cst_13 : f32 to vector<1x16xf32>
    %33 = arith.addf %32, %31 : vector<1x16xf32>
    %34 = arith.divf %32, %33 : vector<1x16xf32>
    %35 = arith.mulf %26, %10 : vector<1x16xf32>
    %36 = arith.mulf %20, %28 : vector<1x16xf32>
    %37 = arith.addf %35, %36 : vector<1x16xf32>
    %38 = math.tanh %37 : vector<1x16xf32>
    %39 = arith.mulf %34, %38 : vector<1x16xf32>
    %40 = vector.extract_strided_slice %7 {offsets = [1, 0], sizes = [1, 64], strides = [1, 1]} : vector<8x64xf32> to vector<1x64xf32>
    %41 = arith.truncf %39 : vector<1x16xf32> to vector<1x16xbf16>
    %cst_14 = arith.constant dense<0.000000e+00> : vector<1x64xf32>
    %42 = tpu.matmul %41, %8, %cst_14 {dimension_numbers = #tpu.dot_dimension_numbers<[1], [0], [0], [1], [0, 0, 1, 1], [], []>} : vector<1x16xbf16>, vector<16x64xbf16>, vector<1x64xf32> -> vector<1x64xf32>
    %43 = arith.addf %40, %42 : vector<1x64xf32>
    %44 = vector.extract_strided_slice %43 {offsets = [0, 0], sizes = [1, 16], strides = [1, 1]} : vector<1x64xf32> to vector<1x16xf32>
    %45 = arith.negf %44 : vector<1x16xf32>
    %46 = math.exp %45 : vector<1x16xf32>
    %cst_15 = arith.constant 1.000000e+00 : f32
    %47 = vector.broadcast %cst_15 : f32 to vector<1x16xf32>
    %48 = arith.addf %47, %46 : vector<1x16xf32>
    %49 = arith.divf %47, %48 : vector<1x16xf32>
    %50 = vector.extract_strided_slice %43 {offsets = [0, 16], sizes = [1, 16], strides = [1, 1]} : vector<1x64xf32> to vector<1x16xf32>
    %51 = arith.negf %50 : vector<1x16xf32>
    %52 = math.exp %51 : vector<1x16xf32>
    %cst_16 = arith.constant 1.000000e+00 : f32
    %53 = vector.broadcast %cst_16 : f32 to vector<1x16xf32>
    %54 = arith.addf %53, %52 : vector<1x16xf32>
    %55 = arith.divf %53, %54 : vector<1x16xf32>
    %56 = vector.extract_strided_slice %43 {offsets = [0, 32], sizes = [1, 16], strides = [1, 1]} : vector<1x64xf32> to vector<1x16xf32>
    %57 = math.tanh %56 : vector<1x16xf32>
    %58 = vector.extract_strided_slice %43 {offsets = [0, 48], sizes = [1, 16], strides = [1, 1]} : vector<1x64xf32> to vector<1x16xf32>
    %59 = arith.negf %58 : vector<1x16xf32>
    %60 = math.exp %59 : vector<1x16xf32>
    %cst_17 = arith.constant 1.000000e+00 : f32
    %61 = vector.broadcast %cst_17 : f32 to vector<1x16xf32>
    %62 = arith.addf %61, %60 : vector<1x16xf32>
    %63 = arith.divf %61, %62 : vector<1x16xf32>
    %64 = arith.mulf %55, %37 : vector<1x16xf32>
    %65 = arith.mulf %49, %57 : vector<1x16xf32>
    %66 = arith.addf %64, %65 : vector<1x16xf32>
    %67 = math.tanh %66 : vector<1x16xf32>
    %68 = arith.mulf %63, %67 : vector<1x16xf32>
    %69 = vector.extract_strided_slice %7 {offsets = [2, 0], sizes = [1, 64], strides = [1, 1]} : vector<8x64xf32> to vector<1x64xf32>
    %70 = arith.truncf %68 : vector<1x16xf32> to vector<1x16xbf16>
    %cst_18 = arith.constant dense<0.000000e+00> : vector<1x64xf32>
    %71 = tpu.matmul %70, %8, %cst_18 {dimension_numbers = #tpu.dot_dimension_numbers<[1], [0], [0], [1], [0, 0, 1, 1], [], []>} : vector<1x16xbf16>, vector<16x64xbf16>, vector<1x64xf32> -> vector<1x64xf32>
    %72 = arith.addf %69, %71 : vector<1x64xf32>
    %73 = vector.extract_strided_slice %72 {offsets = [0, 0], sizes = [1, 16], strides = [1, 1]} : vector<1x64xf32> to vector<1x16xf32>
    %74 = arith.negf %73 : vector<1x16xf32>
    %75 = math.exp %74 : vector<1x16xf32>
    %cst_19 = arith.constant 1.000000e+00 : f32
    %76 = vector.broadcast %cst_19 : f32 to vector<1x16xf32>
    %77 = arith.addf %76, %75 : vector<1x16xf32>
    %78 = arith.divf %76, %77 : vector<1x16xf32>
    %79 = vector.extract_strided_slice %72 {offsets = [0, 16], sizes = [1, 16], strides = [1, 1]} : vector<1x64xf32> to vector<1x16xf32>
    %80 = arith.negf %79 : vector<1x16xf32>
    %81 = math.exp %80 : vector<1x16xf32>
    %cst_20 = arith.constant 1.000000e+00 : f32
    %82 = vector.broadcast %cst_20 : f32 to vector<1x16xf32>
    %83 = arith.addf %82, %81 : vector<1x16xf32>
    %84 = arith.divf %82, %83 : vector<1x16xf32>
    %85 = vector.extract_strided_slice %72 {offsets = [0, 32], sizes = [1, 16], strides = [1, 1]} : vector<1x64xf32> to vector<1x16xf32>
    %86 = math.tanh %85 : vector<1x16xf32>
    %87 = vector.extract_strided_slice %72 {offsets = [0, 48], sizes = [1, 16], strides = [1, 1]} : vector<1x64xf32> to vector<1x16xf32>
    %88 = arith.negf %87 : vector<1x16xf32>
    %89 = math.exp %88 : vector<1x16xf32>
    %cst_21 = arith.constant 1.000000e+00 : f32
    %90 = vector.broadcast %cst_21 : f32 to vector<1x16xf32>
    %91 = arith.addf %90, %89 : vector<1x16xf32>
    %92 = arith.divf %90, %91 : vector<1x16xf32>
    %93 = arith.mulf %84, %66 : vector<1x16xf32>
    %94 = arith.mulf %78, %86 : vector<1x16xf32>
    %95 = arith.addf %93, %94 : vector<1x16xf32>
    %96 = math.tanh %95 : vector<1x16xf32>
    %97 = arith.mulf %92, %96 : vector<1x16xf32>
    %98 = vector.extract_strided_slice %7 {offsets = [3, 0], sizes = [1, 64], strides = [1, 1]} : vector<8x64xf32> to vector<1x64xf32>
    %99 = arith.truncf %97 : vector<1x16xf32> to vector<1x16xbf16>
    %cst_22 = arith.constant dense<0.000000e+00> : vector<1x64xf32>
    %100 = tpu.matmul %99, %8, %cst_22 {dimension_numbers = #tpu.dot_dimension_numbers<[1], [0], [0], [1], [0, 0, 1, 1], [], []>} : vector<1x16xbf16>, vector<16x64xbf16>, vector<1x64xf32> -> vector<1x64xf32>
    %101 = arith.addf %98, %100 : vector<1x64xf32>
    %102 = vector.extract_strided_slice %101 {offsets = [0, 0], sizes = [1, 16], strides = [1, 1]} : vector<1x64xf32> to vector<1x16xf32>
    %103 = arith.negf %102 : vector<1x16xf32>
    %104 = math.exp %103 : vector<1x16xf32>
    %cst_23 = arith.constant 1.000000e+00 : f32
    %105 = vector.broadcast %cst_23 : f32 to vector<1x16xf32>
    %106 = arith.addf %105, %104 : vector<1x16xf32>
    %107 = arith.divf %105, %106 : vector<1x16xf32>
    %108 = vector.extract_strided_slice %101 {offsets = [0, 16], sizes = [1, 16], strides = [1, 1]} : vector<1x64xf32> to vector<1x16xf32>
    %109 = arith.negf %108 : vector<1x16xf32>
    %110 = math.exp %109 : vector<1x16xf32>
    %cst_24 = arith.constant 1.000000e+00 : f32
    %111 = vector.broadcast %cst_24 : f32 to vector<1x16xf32>
    %112 = arith.addf %111, %110 : vector<1x16xf32>
    %113 = arith.divf %111, %112 : vector<1x16xf32>
    %114 = vector.extract_strided_slice %101 {offsets = [0, 32], sizes = [1, 16], strides = [1, 1]} : vector<1x64xf32> to vector<1x16xf32>
    %115 = math.tanh %114 : vector<1x16xf32>
    %116 = vector.extract_strided_slice %101 {offsets = [0, 48], sizes = [1, 16], strides = [1, 1]} : vector<1x64xf32> to vector<1x16xf32>
    %117 = arith.negf %116 : vector<1x16xf32>
    %118 = math.exp %117 : vector<1x16xf32>
    %cst_25 = arith.constant 1.000000e+00 : f32
    %119 = vector.broadcast %cst_25 : f32 to vector<1x16xf32>
    %120 = arith.addf %119, %118 : vector<1x16xf32>
    %121 = arith.divf %119, %120 : vector<1x16xf32>
    %122 = arith.mulf %113, %95 : vector<1x16xf32>
    %123 = arith.mulf %107, %115 : vector<1x16xf32>
    %124 = arith.addf %122, %123 : vector<1x16xf32>
    %125 = math.tanh %124 : vector<1x16xf32>
    %126 = arith.mulf %121, %125 : vector<1x16xf32>
    %127 = vector.extract_strided_slice %7 {offsets = [4, 0], sizes = [1, 64], strides = [1, 1]} : vector<8x64xf32> to vector<1x64xf32>
    %128 = arith.truncf %126 : vector<1x16xf32> to vector<1x16xbf16>
    %cst_26 = arith.constant dense<0.000000e+00> : vector<1x64xf32>
    %129 = tpu.matmul %128, %8, %cst_26 {dimension_numbers = #tpu.dot_dimension_numbers<[1], [0], [0], [1], [0, 0, 1, 1], [], []>} : vector<1x16xbf16>, vector<16x64xbf16>, vector<1x64xf32> -> vector<1x64xf32>
    %130 = arith.addf %127, %129 : vector<1x64xf32>
    %131 = vector.extract_strided_slice %130 {offsets = [0, 0], sizes = [1, 16], strides = [1, 1]} : vector<1x64xf32> to vector<1x16xf32>
    %132 = arith.negf %131 : vector<1x16xf32>
    %133 = math.exp %132 : vector<1x16xf32>
    %cst_27 = arith.constant 1.000000e+00 : f32
    %134 = vector.broadcast %cst_27 : f32 to vector<1x16xf32>
    %135 = arith.addf %134, %133 : vector<1x16xf32>
    %136 = arith.divf %134, %135 : vector<1x16xf32>
    %137 = vector.extract_strided_slice %130 {offsets = [0, 16], sizes = [1, 16], strides = [1, 1]} : vector<1x64xf32> to vector<1x16xf32>
    %138 = arith.negf %137 : vector<1x16xf32>
    %139 = math.exp %138 : vector<1x16xf32>
    %cst_28 = arith.constant 1.000000e+00 : f32
    %140 = vector.broadcast %cst_28 : f32 to vector<1x16xf32>
    %141 = arith.addf %140, %139 : vector<1x16xf32>
    %142 = arith.divf %140, %141 : vector<1x16xf32>
    %143 = vector.extract_strided_slice %130 {offsets = [0, 32], sizes = [1, 16], strides = [1, 1]} : vector<1x64xf32> to vector<1x16xf32>
    %144 = math.tanh %143 : vector<1x16xf32>
    %145 = vector.extract_strided_slice %130 {offsets = [0, 48], sizes = [1, 16], strides = [1, 1]} : vector<1x64xf32> to vector<1x16xf32>
    %146 = arith.negf %145 : vector<1x16xf32>
    %147 = math.exp %146 : vector<1x16xf32>
    %cst_29 = arith.constant 1.000000e+00 : f32
    %148 = vector.broadcast %cst_29 : f32 to vector<1x16xf32>
    %149 = arith.addf %148, %147 : vector<1x16xf32>
    %150 = arith.divf %148, %149 : vector<1x16xf32>
    %151 = arith.mulf %142, %124 : vector<1x16xf32>
    %152 = arith.mulf %136, %144 : vector<1x16xf32>
    %153 = arith.addf %151, %152 : vector<1x16xf32>
    %154 = math.tanh %153 : vector<1x16xf32>
    %155 = arith.mulf %150, %154 : vector<1x16xf32>
    %156 = vector.extract_strided_slice %7 {offsets = [5, 0], sizes = [1, 64], strides = [1, 1]} : vector<8x64xf32> to vector<1x64xf32>
    %157 = arith.truncf %155 : vector<1x16xf32> to vector<1x16xbf16>
    %cst_30 = arith.constant dense<0.000000e+00> : vector<1x64xf32>
    %158 = tpu.matmul %157, %8, %cst_30 {dimension_numbers = #tpu.dot_dimension_numbers<[1], [0], [0], [1], [0, 0, 1, 1], [], []>} : vector<1x16xbf16>, vector<16x64xbf16>, vector<1x64xf32> -> vector<1x64xf32>
    %159 = arith.addf %156, %158 : vector<1x64xf32>
    %160 = vector.extract_strided_slice %159 {offsets = [0, 0], sizes = [1, 16], strides = [1, 1]} : vector<1x64xf32> to vector<1x16xf32>
    %161 = arith.negf %160 : vector<1x16xf32>
    %162 = math.exp %161 : vector<1x16xf32>
    %cst_31 = arith.constant 1.000000e+00 : f32
    %163 = vector.broadcast %cst_31 : f32 to vector<1x16xf32>
    %164 = arith.addf %163, %162 : vector<1x16xf32>
    %165 = arith.divf %163, %164 : vector<1x16xf32>
    %166 = vector.extract_strided_slice %159 {offsets = [0, 16], sizes = [1, 16], strides = [1, 1]} : vector<1x64xf32> to vector<1x16xf32>
    %167 = arith.negf %166 : vector<1x16xf32>
    %168 = math.exp %167 : vector<1x16xf32>
    %cst_32 = arith.constant 1.000000e+00 : f32
    %169 = vector.broadcast %cst_32 : f32 to vector<1x16xf32>
    %170 = arith.addf %169, %168 : vector<1x16xf32>
    %171 = arith.divf %169, %170 : vector<1x16xf32>
    %172 = vector.extract_strided_slice %159 {offsets = [0, 32], sizes = [1, 16], strides = [1, 1]} : vector<1x64xf32> to vector<1x16xf32>
    %173 = math.tanh %172 : vector<1x16xf32>
    %174 = vector.extract_strided_slice %159 {offsets = [0, 48], sizes = [1, 16], strides = [1, 1]} : vector<1x64xf32> to vector<1x16xf32>
    %175 = arith.negf %174 : vector<1x16xf32>
    %176 = math.exp %175 : vector<1x16xf32>
    %cst_33 = arith.constant 1.000000e+00 : f32
    %177 = vector.broadcast %cst_33 : f32 to vector<1x16xf32>
    %178 = arith.addf %177, %176 : vector<1x16xf32>
    %179 = arith.divf %177, %178 : vector<1x16xf32>
    %180 = arith.mulf %171, %153 : vector<1x16xf32>
    %181 = arith.mulf %165, %173 : vector<1x16xf32>
    %182 = arith.addf %180, %181 : vector<1x16xf32>
    %183 = math.tanh %182 : vector<1x16xf32>
    %184 = arith.mulf %179, %183 : vector<1x16xf32>
    %185 = vector.extract_strided_slice %7 {offsets = [6, 0], sizes = [1, 64], strides = [1, 1]} : vector<8x64xf32> to vector<1x64xf32>
    %186 = arith.truncf %184 : vector<1x16xf32> to vector<1x16xbf16>
    %cst_34 = arith.constant dense<0.000000e+00> : vector<1x64xf32>
    %187 = tpu.matmul %186, %8, %cst_34 {dimension_numbers = #tpu.dot_dimension_numbers<[1], [0], [0], [1], [0, 0, 1, 1], [], []>} : vector<1x16xbf16>, vector<16x64xbf16>, vector<1x64xf32> -> vector<1x64xf32>
    %188 = arith.addf %185, %187 : vector<1x64xf32>
    %189 = vector.extract_strided_slice %188 {offsets = [0, 0], sizes = [1, 16], strides = [1, 1]} : vector<1x64xf32> to vector<1x16xf32>
    %190 = arith.negf %189 : vector<1x16xf32>
    %191 = math.exp %190 : vector<1x16xf32>
    %cst_35 = arith.constant 1.000000e+00 : f32
    %192 = vector.broadcast %cst_35 : f32 to vector<1x16xf32>
    %193 = arith.addf %192, %191 : vector<1x16xf32>
    %194 = arith.divf %192, %193 : vector<1x16xf32>
    %195 = vector.extract_strided_slice %188 {offsets = [0, 16], sizes = [1, 16], strides = [1, 1]} : vector<1x64xf32> to vector<1x16xf32>
    %196 = arith.negf %195 : vector<1x16xf32>
    %197 = math.exp %196 : vector<1x16xf32>
    %cst_36 = arith.constant 1.000000e+00 : f32
    %198 = vector.broadcast %cst_36 : f32 to vector<1x16xf32>
    %199 = arith.addf %198, %197 : vector<1x16xf32>
    %200 = arith.divf %198, %199 : vector<1x16xf32>
    %201 = vector.extract_strided_slice %188 {offsets = [0, 32], sizes = [1, 16], strides = [1, 1]} : vector<1x64xf32> to vector<1x16xf32>
    %202 = math.tanh %201 : vector<1x16xf32>
    %203 = vector.extract_strided_slice %188 {offsets = [0, 48], sizes = [1, 16], strides = [1, 1]} : vector<1x64xf32> to vector<1x16xf32>
    %204 = arith.negf %203 : vector<1x16xf32>
    %205 = math.exp %204 : vector<1x16xf32>
    %cst_37 = arith.constant 1.000000e+00 : f32
    %206 = vector.broadcast %cst_37 : f32 to vector<1x16xf32>
    %207 = arith.addf %206, %205 : vector<1x16xf32>
    %208 = arith.divf %206, %207 : vector<1x16xf32>
    %209 = arith.mulf %200, %182 : vector<1x16xf32>
    %210 = arith.mulf %194, %202 : vector<1x16xf32>
    %211 = arith.addf %209, %210 : vector<1x16xf32>
    %212 = math.tanh %211 : vector<1x16xf32>
    %213 = arith.mulf %208, %212 : vector<1x16xf32>
    %214 = vector.extract_strided_slice %7 {offsets = [7, 0], sizes = [1, 64], strides = [1, 1]} : vector<8x64xf32> to vector<1x64xf32>
    %215 = arith.truncf %213 : vector<1x16xf32> to vector<1x16xbf16>
    %cst_38 = arith.constant dense<0.000000e+00> : vector<1x64xf32>
    %216 = tpu.matmul %215, %8, %cst_38 {dimension_numbers = #tpu.dot_dimension_numbers<[1], [0], [0], [1], [0, 0, 1, 1], [], []>} : vector<1x16xbf16>, vector<16x64xbf16>, vector<1x64xf32> -> vector<1x64xf32>
    %217 = arith.addf %214, %216 : vector<1x64xf32>
    %218 = vector.extract_strided_slice %217 {offsets = [0, 0], sizes = [1, 16], strides = [1, 1]} : vector<1x64xf32> to vector<1x16xf32>
    %219 = arith.negf %218 : vector<1x16xf32>
    %220 = math.exp %219 : vector<1x16xf32>
    %cst_39 = arith.constant 1.000000e+00 : f32
    %221 = vector.broadcast %cst_39 : f32 to vector<1x16xf32>
    %222 = arith.addf %221, %220 : vector<1x16xf32>
    %223 = arith.divf %221, %222 : vector<1x16xf32>
    %224 = vector.extract_strided_slice %217 {offsets = [0, 16], sizes = [1, 16], strides = [1, 1]} : vector<1x64xf32> to vector<1x16xf32>
    %225 = arith.negf %224 : vector<1x16xf32>
    %226 = math.exp %225 : vector<1x16xf32>
    %cst_40 = arith.constant 1.000000e+00 : f32
    %227 = vector.broadcast %cst_40 : f32 to vector<1x16xf32>
    %228 = arith.addf %227, %226 : vector<1x16xf32>
    %229 = arith.divf %227, %228 : vector<1x16xf32>
    %230 = vector.extract_strided_slice %217 {offsets = [0, 32], sizes = [1, 16], strides = [1, 1]} : vector<1x64xf32> to vector<1x16xf32>
    %231 = math.tanh %230 : vector<1x16xf32>
    %232 = vector.extract_strided_slice %217 {offsets = [0, 48], sizes = [1, 16], strides = [1, 1]} : vector<1x64xf32> to vector<1x16xf32>
    %233 = arith.negf %232 : vector<1x16xf32>
    %234 = math.exp %233 : vector<1x16xf32>
    %cst_41 = arith.constant 1.000000e+00 : f32
    %235 = vector.broadcast %cst_41 : f32 to vector<1x16xf32>
    %236 = arith.addf %235, %234 : vector<1x16xf32>
    %237 = arith.divf %235, %236 : vector<1x16xf32>
    %238 = arith.mulf %229, %211 : vector<1x16xf32>
    %239 = arith.mulf %223, %231 : vector<1x16xf32>
    %240 = arith.addf %238, %239 : vector<1x16xf32>
    %241 = math.tanh %240 : vector<1x16xf32>
    %242 = arith.mulf %237, %241 : vector<1x16xf32>
    %243 = tpu.concatenate %39, %68, %97, %126, %155, %184, %213, %242 in 0 : vector<1x16xf32>, vector<1x16xf32>, vector<1x16xf32>, vector<1x16xf32>, vector<1x16xf32>, vector<1x16xf32>, vector<1x16xf32>, vector<1x16xf32> -> vector<8x16xf32>
    %cst_42 = arith.constant 0.000000e+00 : f32
    %244 = vector.broadcast %cst_42 : f32 to vector<8x16xf32>
    %245 = arith.maximumf %243, %244 : vector<8x16xf32>
    %246 = vector.shape_cast %245 : vector<8x16xf32> to vector<1x8x16xf32>
    %c0_43 = arith.constant 0 : index
    %c0_44 = arith.constant 0 : index
    %c0_45 = arith.constant 0 : index
    %247 = vector.load %arg5[%c0_43, %c0_44, %c0_45] : memref<1x8x32xf32, #tpu.memory_space<vmem>>, vector<1x8x16xf32>
    tpu.vector_store %arg5[%c0_43, %c0_44, %c0_45], %246 {strides = array<i32>} : memref<1x8x32xf32, #tpu.memory_space<vmem>>, vector<1x8x16xf32>,
    %cst_46 = arith.constant 0.000000e+00 : f32
    %248 = vector.broadcast %cst_46 : f32 to vector<8x16xf32>
    %249 = arith.maximumf %1, %248 : vector<8x16xf32>
    %250 = vector.shape_cast %249 : vector<8x16xf32> to vector<1x8x16xf32>
    %c0_47 = arith.constant 0 : index
    %c0_48 = arith.constant 0 : index
    %c16 = arith.constant 16 : index
    %251 = vector.load %arg5[%c0_47, %c0_48, %c16] : memref<1x8x32xf32, #tpu.memory_space<vmem>>, vector<1x8x16xf32>
    tpu.vector_store %arg5[%c0_47, %c0_48, %c16], %250 {strides = array<i32>} : memref<1x8x32xf32, #tpu.memory_space<vmem>>, vector<1x8x16xf32>,
    return
  }
  func.func @transform_0(%arg0: i32) -> (i32, i32, i32) {
    %c0_i32 = arith.constant 0 : i32
    %c0_i32_0 = arith.constant 0 : i32
    %c0_i32_1 = arith.constant 0 : i32
    return %arg0, %c0_i32, %c0_i32_0 : i32, i32, i32
  }
  func.func @transform_1(%arg0: i32) -> (i32, i32) {
    %c0_i32 = arith.constant 0 : i32
    %c0_i32_0 = arith.constant 0 : i32
    %c0_i32_1 = arith.constant 0 : i32
    return %c0_i32, %c0_i32_0 : i32, i32
  }
  func.func @transform_2(%arg0: i32) -> (i32, i32) {
    %c0_i32 = arith.constant 0 : i32
    %c0_i32_0 = arith.constant 0 : i32
    %c0_i32_1 = arith.constant 0 : i32
    return %c0_i32, %c0_i32_0 : i32, i32
  }
  func.func @transform_3(%arg0: i32) -> (i32, i32) {
    %c0_i32 = arith.constant 0 : i32
    %c0_i32_0 = arith.constant 0 : i32
    %c0_i32_1 = arith.constant 0 : i32
    return %c0_i32, %c0_i32_0 : i32, i32
  }
  func.func @transform_4(%arg0: i32) -> (i32, i32, i32) {
    %c0_i32 = arith.constant 0 : i32
    %c0_i32_0 = arith.constant 0 : i32
    %c0_i32_1 = arith.constant 0 : i32
    return %arg0, %c0_i32, %c0_i32_0 : i32, i32, i32
  }
}

</mosaic_0001>

<llo_original>
// kernel: tpu_custom_call.1
$region0: #{tpu_custom_call.1}
  #allocation0 [shape = 'u32[]', space=smem, size = 0x4, offset = 0x4, fixed_abs, tag = 'smem constant byte address 0x4 - core index']
  #allocation1 [shape = 'u32[144,128]{1,0:T(1,128)}', space=vmem, size = 0x12000, scoped, tag = 'internal scratch']
  %s0 = inlined_call_operand.hbm [shape: f32[2,8,16], index: 0, kind: input, shape index: {}]
  %s1 = inlined_call_operand.hbm [shape: bf16[16,64], index: 1, kind: input, shape index: {}]
  %s2 = inlined_call_operand.hbm [shape: bf16[16,64], index: 2, kind: input, shape index: {}]
  %s3 = inlined_call_operand.vmem [shape: f32[1,64], index: 3, kind: input, shape index: {}]
  %s4 = inlined_call_operand.hbm [shape: f32[2,8,32], index: 4, kind: output, shape index: {}]
  %s5 = sld [smem:[#allocation0]]
  $region61: #{tpu_custom_call.1} parent=0
    _
  %s7 = ssub.s32 1, %s5
  %s8 = scalar_select 0, %s7, %s5
  $region1: #{tpu_custom_call.1} parent=0
    #allocation2 [shape = 'u8[8192]{0}', space=vmem, size = 0x2000, scoped, tag = 'input window, operand 0']
    #allocation3 [shape = 's32[2]{0}', space=sflag, size = 0x8, scoped, tag = 'scoped memory for tpu_custom_call.1']
    #allocation4 [shape = 's32[2]{0}', space=sflag, size = 0x8, scoped, tag = 'scoped memory for tpu_custom_call.1']
    #allocation5 [shape = 'u8[4096]{0}', space=vmem, size = 0x1000, scoped, tag = 'input window, operand 1, single buffered']
    #allocation6 [shape = 's32[1]{0}', space=sflag, size = 0x4, scoped, tag = 'scoped memory for tpu_custom_call.1']
    #allocation7 [shape = 'u8[4096]{0}', space=vmem, size = 0x1000, scoped, tag = 'input window, operand 2, single buffered']
    #allocation8 [shape = 'u8[8192]{0}', space=vmem, size = 0x2000, scoped, tag = 'output window, operand 0']
    %9 = vsyncpa [#allocation3], 0
    %s10 = scalar_lea.sflag [#allocation3], 1
    %11 = vsyncpa %s10, 0
    %12 = vsyncpa [#allocation6], 0
    %13 = vsyncpa [#allocation4], 0
    %s14 = scalar_lea.sflag [#allocation4], 1
    %15 = vsyncpa %s14, 0
    loop: start=0, step=1, limit=4
    $region2: #{tpu_custom_call.1} parent=1 // loop_pre_header
      _
    $region3: #{tpu_custom_call.1} parent=1 // loop_header
      %s17 = sphi 0, %s21
      %p18 = scmp.ge.s32.totalorder %s17, 4
      %s27 = sphi 0, %s29
      %s30 = sphi 0, %s27
      %s31 = sphi 0, %s30
      %s47 = sphi 0, %s31
      %s51 = sphi 0, %s51
      %s53 = sphi 0, %s51
      %s54 = sphi 0, %s53
      %s68 = sphi 0, %s54
      %s72 = sphi 0, %s72
      %s74 = sphi 0, %s72
      %s75 = sphi 0, %s74
      %s89 = sphi 0, %s75
      %s93 = sphi 0, %s93
      %s95 = sphi 0, %s93
      %s96 = sphi 0, %s95
      %s110 = sphi 0, %s96
      %s116 = sphi 0, %s118
      %s119 = sphi 0, %s116
      %s120 = sphi 0, %s119
      %s136 = sphi 0, %s120
    $region4: #{tpu_custom_call.1} parent=1 // loop_header_branch
      %20 = sbr.rel (%p18) target = $region8
    $region5: #{tpu_custom_call.1} parent=1 // loop_body
      %s22 = ssub.s32 %s17, 1
      %s23 = ssub.s32 %s17, 2
      %s24 = sadd.s32 %s17, 1
      %s25 = ssub.s32 %s17, %s24
      %p26 = scmp.eq.s32.totalorder %s25, 0
      %s28 = sadd.s32 %s27, 1
      %s29 = scalar_select %p26, %s27, %s28
      %p32 = pneg %p26
      %p33 = scmp.eq.s32.totalorder %s17, 1
      %p34 = por %p32, %p33
      %p35 = scmp.ne.s32.totalorder %s27, %s30
      %p36 = scmp.eq.s32.totalorder %s17, 0
      %p37 = por %p35, %p36
      %p38 = scmp.ne.s32.totalorder %s27, %s30
      %p39 = scmp.eq.s32.totalorder %s22, 1
      %p40 = por %p38, %p39
      %p41 = scmp.ne.s32.totalorder %s30, %s31
      %p42 = scmp.eq.s32.totalorder %s22, 0
      %p43 = por %p41, %p42
      %p44 = scmp.ne.s32.totalorder %s30, %s31
      %p45 = scmp.eq.s32.totalorder %s23, 1
      %p46 = por %p44, %p45
      %p48 = scmp.ne.s32.totalorder %s31, %s47
      %p49 = scmp.eq.s32.totalorder %s23, 0
      %p50 = por %p48, %p49
      %s52 = sadd.s32 %s51, 1
      %p55 = scmp.eq.s32.totalorder %s17, 1
      %p56 = scmp.ne.s32.totalorder %s51, %s53
      %p57 = scmp.eq.s32.totalorder %s17, 0
      %p58 = por %p56, %p57
      %p59 = scmp.ne.s32.totalorder %s51, %s53
      %p60 = scmp.eq.s32.totalorder %s22, 1
      %p61 = por %p59, %p60
      %p62 = scmp.ne.s32.totalorder %s53, %s54
      %p63 = scmp.eq.s32.totalorder %s22, 0
      %p64 = por %p62, %p63
      %p65 = scmp.ne.s32.totalorder %s53, %s54
      %p66 = scmp.eq.s32.totalorder %s23, 1
      %p67 = por %p65, %p66
      %p69 = scmp.ne.s32.totalorder %s54, %s68
      %p70 = scmp.eq.s32.totalorder %s23, 0
      %p71 = por %p69, %p70
      %s73 = sadd.s32 %s72, 1
      %p76 = scmp.eq.s32.totalorder %s17, 1
      %p77 = scmp.ne.s32.totalorder %s72, %s74
      %p78 = scmp.eq.s32.totalorder %s17, 0
      %p79 = por %p77, %p78
      %p80 = scmp.ne.s32.totalorder %s72, %s74
      %p81 = scmp.eq.s32.totalorder %s22, 1
      %p82 = por %p80, %p81
      %p83 = scmp.ne.s32.totalorder %s74, %s75
      %p84 = scmp.eq.s32.totalorder %s22, 0
      %p85 = por %p83, %p84
      %p86 = scmp.ne.s32.totalorder %s74, %s75
      %p87 = scmp.eq.s32.totalorder %s23, 1
      %p88 = por %p86, %p87
      %p90 = scmp.ne.s32.totalorder %s75, %s89
      %p91 = scmp.eq.s32.totalorder %s23, 0
      %p92 = por %p90, %p91
      %s94 = sadd.s32 %s93, 1
      %p97 = scmp.eq.s32.totalorder %s17, 1
      %p98 = scmp.ne.s32.totalorder %s93, %s95
      %p99 = scmp.eq.s32.totalorder %s17, 0
      %p100 = por %p98, %p99
      %p101 = scmp.ne.s32.totalorder %s93, %s95
      %p102 = scmp.eq.s32.totalorder %s22, 1
      %p103 = por %p101, %p102
      %p104 = scmp.ne.s32.totalorder %s95, %s96
      %p105 = scmp.eq.s32.totalorder %s22, 0
      %p106 = por %p104, %p105
      %p107 = scmp.ne.s32.totalorder %s95, %s96
      %p108 = scmp.eq.s32.totalorder %s23, 1
      %p109 = por %p107, %p108
      %p111 = scmp.ne.s32.totalorder %s96, %s110
      %p112 = scmp.eq.s32.totalorder %s23, 0
      %p113 = por %p111, %p112
      %s114 = ssub.s32 %s17, %s24
      %p115 = scmp.eq.s32.totalorder %s114, 0
      %s117 = sadd.s32 %s116, 1
      %s118 = scalar_select %p115, %s116, %s117
      %p121 = pneg %p115
      %p122 = scmp.eq.s32.totalorder %s17, 1
      %p123 = por %p121, %p122
      %p124 = scmp.ne.s32.totalorder %s116, %s119
      %p125 = scmp.eq.s32.totalorder %s17, 0
      %p126 = por %p124, %p125
      %p127 = scmp.ne.s32.totalorder %s116, %s119
      %p128 = scmp.eq.s32.totalorder %s22, 1
      %p129 = por %p127, %p128
      %p130 = scmp.ne.s32.totalorder %s119, %s120
      %p131 = scmp.eq.s32.totalorder %s22, 0
      %p132 = por %p130, %p131
      %p133 = scmp.ne.s32.totalorder %s119, %s120
      %p134 = scmp.eq.s32.totalorder %s23, 1
      %p135 = por %p133, %p134
      %p137 = scmp.ne.s32.totalorder %s120, %s136
      %p138 = scmp.eq.s32.totalorder %s23, 0
      %p139 = por %p137, %p138
      %p140 = scmp.le.s32.totalorder 1, %s17
      %p141 = scmp.lt.s32.totalorder %s17, 3
      %p142 = pnand %p140, %p141
      %p143 = pneg %p142
      // Predicated region
      $region9: #{tpu_custom_call.1} parent=5 // pred_check
        _
      $region10: #{tpu_custom_call.1} parent=5 // pred_check_branch
        %145 = sbr.rel (%p142) target = $region12
      $region11: #{tpu_custom_call.1} parent=5 // pred_region
        %s146 = ssub.s32 %s17, 1
        // Predicated region
        $region13: #{tpu_custom_call.1} parent=11 // pred_check
          %p147 = pneg %p64
        $region14: #{tpu_custom_call.1} parent=11 // pred_check_branch
          %149 = sbr.rel (%p147) target = $region16
        $region15: #{tpu_custom_call.1} parent=11 // pred_region
          %s151 = ssub.s32 128, 128
          %152 = vsyncadd [#allocation6], %s151
          %s153 = sshll.u32 [#allocation5], 4
          %s154 = int_to_ptr.vmem [resolvable:$true] %s153
          %159 = dma.hbm_to_vmem [thread:$0]  %s1, 128, %s154, [#allocation6], 64, 64, 4
        $region16: #{tpu_custom_call.1} parent=11 // pred_fallthru
          _
        // Predicated region
        $region17: #{tpu_custom_call.1} parent=11 // pred_check
          %p160 = pneg %p85
        $region18: #{tpu_custom_call.1} parent=11 // pred_check_branch
          %162 = sbr.rel (%p160) target = $region20
        $region19: #{tpu_custom_call.1} parent=11 // pred_region
          %s164 = ssub.s32 128, 128
          %165 = vsyncadd [#allocation6], %s164
          %s166 = sshll.u32 [#allocation7], 4
          %s167 = int_to_ptr.vmem [resolvable:$true] %s166
          %172 = dma.hbm_to_vmem [thread:$0]  %s2, 128, %s167, [#allocation6], 64, 64, 4
        $region20: #{tpu_custom_call.1} parent=11 // pred_fallthru
          _
        // Predicated region
        $region21: #{tpu_custom_call.1} parent=11 // pred_check
          %p173 = pneg %p106
        $region22: #{tpu_custom_call.1} parent=11 // pred_check_branch
          %175 = sbr.rel (%p173) target = $region24
        $region23: #{tpu_custom_call.1} parent=11 // pred_region
          _
        $region24: #{tpu_custom_call.1} parent=11 // pred_fallthru
          _
      $region12: #{tpu_custom_call.1} parent=5 // pred_fallthru
        _
      %p176 = scmp.lt.s32.totalorder %s17, 2
      // Predicated region
      $region25: #{tpu_custom_call.1} parent=5 // pred_check
        %p177 = pneg %p176
      $region26: #{tpu_custom_call.1} parent=5 // pred_check_branch
        %179 = sbr.rel (%p177) target = $region28
      $region27: #{tpu_custom_call.1} parent=5 // pred_region
        // Predicated region
        $region29: #{tpu_custom_call.1} parent=27 // pred_check
          %p180 = pneg %p37
        $region30: #{tpu_custom_call.1} parent=27 // pred_check_branch
          %182 = sbr.rel (%p180) target = $region32
        $region31: #{tpu_custom_call.1} parent=27 // pred_region
          %s183 = sand.u32 %s27, 1
          %s184 = scalar_lea.sflag [#allocation3], %s183
          %s185 = sand.u32 %s27, 1
          %s186 = smul.addr %s185, 8
          %s187 = scalar_lea.vmem [#allocation2], %s186
          %s189 = ssub.s32 128, 128
          %190 = vsyncadd %s184, %s189
          %s191 = smul.addr %s17, 128
          %s192 = scalar_lea.hbm %s0, %s191
          %s194 = sshll.u32 %s187, 4
          %s195 = int_to_ptr.vmem [resolvable:$true] %s194
          %197 = dma.hbm_to_vmem [thread:$0]  %s192, 128, %s195, %s184
        $region32: #{tpu_custom_call.1} parent=27 // pred_fallthru
          _
      $region28: #{tpu_custom_call.1} parent=5 // pred_fallthru
        _
      %p198 = scmp.le.s32.totalorder 1, %s17
      %p199 = scmp.lt.s32.totalorder %s17, 3
      %p200 = pnand %p198, %p199
      %p201 = pneg %p200
      // Predicated region
      $region33: #{tpu_custom_call.1} parent=5 // pred_check
        _
      $region34: #{tpu_custom_call.1} parent=5 // pred_check_branch
        %203 = sbr.rel (%p200) target = $region36
      $region35: #{tpu_custom_call.1} parent=5 // pred_region
        %s204 = ssub.s32 %s17, 1
        %s205 = sand.u32 %s30, 1
        %s206 = scalar_lea.sflag [#allocation3], %s205
        %s207 = sand.u32 %s30, 1
        %s208 = smul.addr %s207, 8
        %s209 = scalar_lea.vmem [#allocation2], %s208
        // Predicated region
        $region37: #{tpu_custom_call.1} parent=35 // pred_check
          %p210 = pneg %p43
        $region38: #{tpu_custom_call.1} parent=35 // pred_check_branch
          %212 = sbr.rel (%p210) target = $region40
        $region39: #{tpu_custom_call.1} parent=35 // pred_region
          %213 = dma.done %s206, 128
        $region40: #{tpu_custom_call.1} parent=35 // pred_fallthru
          _
        // Predicated region
        $region41: #{tpu_custom_call.1} parent=35 // pred_check
          %p214 = pneg %p64
        $region42: #{tpu_custom_call.1} parent=35 // pred_check_branch
          %216 = sbr.rel (%p214) target = $region44
        $region43: #{tpu_custom_call.1} parent=35 // pred_region
          %217 = dma.done [#allocation6], 128
        $region44: #{tpu_custom_call.1} parent=35 // pred_fallthru
          _
        // Predicated region
        $region45: #{tpu_custom_call.1} parent=35 // pred_check
          %p218 = pneg %p85
        $region46: #{tpu_custom_call.1} parent=35 // pred_check_branch
          %220 = sbr.rel (%p218) target = $region48
        $region47: #{tpu_custom_call.1} parent=35 // pred_region
          %221 = dma.done [#allocation6], 128
        $region48: #{tpu_custom_call.1} parent=35 // pred_fallthru
          _
        %s222 = sand.u32 %s30, 1
        %s223 = scalar_lea.sflag [#allocation3], %s222
        %s224 = sand.u32 %s30, 1
        %s225 = smul.addr %s224, 8
        %s226 = scalar_lea.vmem [#allocation2], %s225
        %p227 = pneg %p43
        %p228 = pneg %p40
        %p229 = pneg %p64
        %p230 = pneg %p61
        %p231 = pneg %p85
        %p232 = pneg %p82
        %p233 = pneg %p106
        %p234 = pneg %p103
        %p235 = pneg %p132
        %p236 = pneg %p129
        %s237 = sand.u32 %s119, 1
        %s238 = scalar_lea.sflag [#allocation4], %s237
        %s239 = sand.u32 %s119, 1
        %s240 = smul.addr %s239, 8
        %s241 = scalar_lea.vmem [#allocation8], %s240
        %v243 = vld [vmem:[%s209] sm:$0xff]
        %v244 = vld [vmem:[#allocation5] sm:$0xf]
        %v245 = vld [vmem:[#allocation5 + $0x4] sm:$0xf]
        %v246 = vpack.c.bf16 %v243, %v243
        %v247 = vld [vmem:[%s3] sm:$0x1]
        %v249 = vlaneseq
        %v250 = vshrl.u32 %v249, 7
        %v251 = vsub.s32 0, %v250
        %v252 = vrot.slane %v247, %v251
        %v256 = vunpack.c.l.b16 %v244
        %v257 = vunpack.c.l.b16 %v245
        %v258 = vpack.c.b16 %v257, %v256
        %vm260 = vcmask 130048
        %v262 = vsel %vm260, %v246, 0
        %264 = vmatprep.subr.bf16.mxu0 0
        %265 = vmatpush1.bf16.msra.mxu0 %v258
        %266 = vmatprep.subr.bf16.mxu0 0
        %267 = vmatpush1.bf16.msra.mxu0 0
        %268 = vmatprep.subr.bf16.mxu0 0
        %269 = vmatpush1.bf16.msra.mxu0 0
        %270 = vmatprep.subr.bf16.mxu0 0
        %271 = vmatpush1.bf16.msra.mxu0 0
        %272 = vmatprep.subr.bf16.mxu0 0
        %273 = vmatpush1.bf16.msra.mxu0 0
        %274 = vmatprep.subr.bf16.mxu0 0
        %275 = vmatpush1.bf16.msra.mxu0 0
        %276 = vmatprep.subr.bf16.mxu0 0
        %277 = vmatpush1.bf16.msra.mxu0 0
        %278 = vmatprep.subr.bf16.mxu0 0
        %279 = vmatpush1.bf16.msra.mxu0 0
        %280 = vmatprep.subr.bf16.mxu0 0
        %281 = vmatpush1.bf16.msra.mxu0 0
        %282 = vmatprep.subr.bf16.mxu0 0
        %283 = vmatpush1.bf16.msra.mxu0 0
        %284 = vmatprep.subr.bf16.mxu0 0
        %285 = vmatpush1.bf16.msra.mxu0 0
        %286 = vmatprep.subr.bf16.mxu0 0
        %287 = vmatpush1.bf16.msra.mxu0 0
        %288 = vmatprep.subr.bf16.mxu0 0
        %289 = vmatpush1.bf16.msra.mxu0 0
        %290 = vmatprep.subr.bf16.mxu0 0
        %291 = vmatpush1.bf16.msra.mxu0 0
        %292 = vmatprep.subr.bf16.mxu0 0
        %293 = vmatpush1.bf16.msra.mxu0 0
        %294 = vmatprep.subr.bf16.mxu0 0
        %295 = vmatpush1.bf16.msra.mxu0 0
        %296 = vmatprep.mubr.bf16.mxu0 0
        %297 = vmatmul.mubr.bf16.gmra.mrb[0].mxu0 %v262
        %v298 = vpop.f32.mrb[0].mxu0
        %v299 = vadd.f32 %v252, %v298
        %v300 = vpop.f32.mrb[0].mxu0
        %v301 = vpop.f32.mrb[0].mxu0
        %v302 = vpop.f32.mrb[0].mxu0
        %303 = vdwg.mxu0
        %v304 = vld [vmem:[#allocation7] sm:$0xf]
        %v305 = vld [vmem:[#allocation7 + $0x4] sm:$0xf]
        %v308 = vunpack.c.l.b16 %v304
        %v309 = vunpack.c.l.b16 %v305
        %v310 = vpack.c.b16 %v309, %v308
        %v313 = vsel %vm260, 0, 0
        %315 = vmatprep.subr.bf16.mxu0 0
        %316 = vmatpush1.bf16.msra.mxu0 %v310
        %317 = vmatprep.subr.bf16.mxu0 0
        %318 = vmatpush1.bf16.msra.mxu0 0
        %319 = vmatprep.subr.bf16.mxu0 0
        %320 = vmatpush1.bf16.msra.mxu0 0
        %321 = vmatprep.subr.bf16.mxu0 0
        %322 = vmatpush1.bf16.msra.mxu0 0
        %323 = vmatprep.subr.bf16.mxu0 0
        %324 = vmatpush1.bf16.msra.mxu0 0
        %325 = vmatprep.subr.bf16.mxu0 0
        %326 = vmatpush1.bf16.msra.mxu0 0
        %327 = vmatprep.subr.bf16.mxu0 0
        %328 = vmatpush1.bf16.msra.mxu0 0
        %329 = vmatprep.subr.bf16.mxu0 0
        %330 = vmatpush1.bf16.msra.mxu0 0
        %331 = vmatprep.subr.bf16.mxu0 0
        %332 = vmatpush1.bf16.msra.mxu0 0
        %333 = vmatprep.subr.bf16.mxu0 0
        %334 = vmatpush1.bf16.msra.mxu0 0
        %335 = vmatprep.subr.bf16.mxu0 0
        %336 = vmatpush1.bf16.msra.mxu0 0
        %337 = vmatprep.subr.bf16.mxu0 0
        %338 = vmatpush1.bf16.msra.mxu0 0
        %339 = vmatprep.subr.bf16.mxu0 0
        %340 = vmatpush1.bf16.msra.mxu0 0
        %341 = vmatprep.subr.bf16.mxu0 0
        %342 = vmatpush1.bf16.msra.mxu0 0
        %343 = vmatprep.subr.bf16.mxu0 0
        %344 = vmatpush1.bf16.msra.mxu0 0
        %345 = vmatprep.subr.bf16.mxu0 0
        %346 = vmatpush1.bf16.msra.mxu0 0
        %347 = vmatprep.mubr.bf16.mxu0 0
        %348 = vmatmul.mubr.bf16.gmra.mrb[0].mxu0 %v313
        %v349 = vpop.f32.mrb[0].mxu0
        %v350 = vadd.f32 0.0, %v349
        %v351 = vpop.f32.mrb[0].mxu0
        %v352 = vpop.f32.mrb[0].mxu0
        %v353 = vpop.f32.mrb[0].mxu0
        %354 = vdwg.mxu0
        %v355 = vadd.f32 %v299, %v350
        %v356 = vxor.u32 %v355, 2147483648
        %v357 = vmul.f32 %v356, 1.442695
        %v358 = vpow.pop %v357
        %v359 = vadd.f32 %v358, 1.0
        %v360 = vrcp.pop %v359
        %v361 = vmul.f32 1.0, %v360
        %v362 = vtanh.pop %v355
        %v363 = vmul.f32 %v361, 0.0
        %365 = vrot.lane.b32.xlu0 %v362, 96
        %v366 = vpop.permute.xlu0 %365
        %v368 = vmul.f32 %v361, %v366
        %370 = vrot.lane.b32.xlu0 %v368, 16
        %v371 = vpop.permute.xlu0 %370
        %v373 = vadd.f32 %v363, %v371
        %v374 = vtanh.pop %v373
        %376 = vrot.lane.b32.xlu0 %v374, 32
        %v377 = vpop.permute.xlu0 %376
        %v379 = vmul.f32 %v361, %v377
        %v380 = vpack.c.bf16 %v379, %v379
        %382 = vrot.lane.b32.xlu0 %v380, 80
        %v383 = vpop.permute.xlu0 %382
        %v385 = vsel %vm260, %v383, 0
        %387 = vmatprep.subr.bf16.mxu0 0
        %388 = vmatpush1.bf16.msra.mxu0 %v310
        %389 = vmatprep.subr.bf16.mxu0 0
        %390 = vmatpush1.bf16.msra.mxu0 0
        %391 = vmatprep.subr.bf16.mxu0 0
        %392 = vmatpush1.bf16.msra.mxu0 0
        %393 = vmatprep.subr.bf16.mxu0 0
        %394 = vmatpush1.bf16.msra.mxu0 0
        %395 = vmatprep.subr.bf16.mxu0 0
        %396 = vmatpush1.bf16.msra.mxu0 0
        %397 = vmatprep.subr.bf16.mxu0 0
        %398 = vmatpush1.bf16.msra.mxu0 0
        %399 = vmatprep.subr.bf16.mxu0 0
        %400 = vmatpush1.bf16.msra.mxu0 0
        %401 = vmatprep.subr.bf16.mxu0 0
        %402 = vmatpush1.bf16.msra.mxu0 0
        %403 = vmatprep.subr.bf16.mxu0 0
        %404 = vmatpush1.bf16.msra.mxu0 0
        %405 = vmatprep.subr.bf16.mxu0 0
        %406 = vmatpush1.bf16.msra.mxu0 0
        %407 = vmatprep.subr.bf16.mxu0 0
        %408 = vmatpush1.bf16.msra.mxu0 0
        %409 = vmatprep.subr.bf16.mxu0 0
        %410 = vmatpush1.bf16.msra.mxu0 0
        %411 = vmatprep.subr.bf16.mxu0 0
        %412 = vmatpush1.bf16.msra.mxu0 0
        %413 = vmatprep.subr.bf16.mxu0 0
        %414 = vmatpush1.bf16.msra.mxu0 0
        %415 = vmatprep.subr.bf16.mxu0 0
        %416 = vmatpush1.bf16.msra.mxu0 0
        %417 = vmatprep.subr.bf16.mxu0 0
        %418 = vmatpush1.bf16.msra.mxu0 0
        %419 = vmatprep.mubr.bf16.mxu0 0
        %420 = vmatmul.mubr.bf16.gmra.mrb[0].mxu0 %v385
        %v421 = vpop.f32.mrb[0].mxu0
        %v422 = vadd.f32 0.0, %v421
        %v423 = vpop.f32.mrb[0].mxu0
        %v424 = vpop.f32.mrb[0].mxu0
        %v425 = vpop.f32.mrb[0].mxu0
        %426 = vdwg.mxu0
        %v428 = vrot.slane %v422, 7
        %v430 = vadd.f32 %v299, %v428
        %v431 = vxor.u32 %v430, 2147483648
        %v432 = vmul.f32 %v431, 1.442695
        %v433 = vpow.pop %v432
        %v434 = vadd.f32 %v433, 1.0
        %v435 = vrcp.pop %v434
        %v436 = vmul.f32 1.0, %v435
        %v437 = vtanh.pop %v430
        %v439 = vrot.slane %v373, 7
        %v441 = vmul.f32 %v436, %v439
        %443 = vrot.lane.b32.xlu0 %v437, 96
        %v444 = vpop.permute.xlu0 %443
        %v446 = vmul.f32 %v436, %v444
        %448 = vrot.lane.b32.xlu0 %v446, 16
        %v449 = vpop.permute.xlu0 %448
        %v451 = vadd.f32 %v441, %v449
        %v452 = vtanh.pop %v451
        %454 = vrot.lane.b32.xlu0 %v452, 32
        %v455 = vpop.permute.xlu0 %454
        %v457 = vmul.f32 %v436, %v455
        %v458 = vpack.c.bf16 %v457, %v457
        %v460 = vshrl.u32 %v458, 16
        %462 = vrot.lane.b32.xlu0 %v460, 80
        %v463 = vpop.permute.xlu0 %462
        %v465 = vsel %vm260, %v463, 0
        %467 = vmatprep.subr.bf16.mxu0 0
        %468 = vmatpush1.bf16.msra.mxu0 %v310
        %469 = vmatprep.subr.bf16.mxu0 0
        %470 = vmatpush1.bf16.msra.mxu0 0
        %471 = vmatprep.subr.bf16.mxu0 0
        %472 = vmatpush1.bf16.msra.mxu0 0
        %473 = vmatprep.subr.bf16.mxu0 0
        %474 = vmatpush1.bf16.msra.mxu0 0
        %475 = vmatprep.subr.bf16.mxu0 0
        %476 = vmatpush1.bf16.msra.mxu0 0
        %477 = vmatprep.subr.bf16.mxu0 0
        %478 = vmatpush1.bf16.msra.mxu0 0
        %479 = vmatprep.subr.bf16.mxu0 0
        %480 = vmatpush1.bf16.msra.mxu0 0
        %481 = vmatprep.subr.bf16.mxu0 0
        %482 = vmatpush1.bf16.msra.mxu0 0
        %483 = vmatprep.subr.bf16.mxu0 0
        %484 = vmatpush1.bf16.msra.mxu0 0
        %485 = vmatprep.subr.bf16.mxu0 0
        %486 = vmatpush1.bf16.msra.mxu0 0
        %487 = vmatprep.subr.bf16.mxu0 0
        %488 = vmatpush1.bf16.msra.mxu0 0
        %489 = vmatprep.subr.bf16.mxu0 0
        %490 = vmatpush1.bf16.msra.mxu0 0
        %491 = vmatprep.subr.bf16.mxu0 0
        %492 = vmatpush1.bf16.msra.mxu0 0
        %493 = vmatprep.subr.bf16.mxu0 0
        %494 = vmatpush1.bf16.msra.mxu0 0
        %495 = vmatprep.subr.bf16.mxu0 0
        %496 = vmatpush1.bf16.msra.mxu0 0
        %497 = vmatprep.subr.bf16.mxu0 0
        %498 = vmatpush1.bf16.msra.mxu0 0
        %499 = vmatprep.mubr.bf16.mxu0 0
        %500 = vmatmul.mubr.bf16.gmra.mrb[0].mxu0 %v465
        %v501 = vpop.f32.mrb[0].mxu0
        %v502 = vadd.f32 0.0, %v501
        %v503 = vpop.f32.mrb[0].mxu0
        %v504 = vpop.f32.mrb[0].mxu0
        %v505 = vpop.f32.mrb[0].mxu0
        %506 = vdwg.mxu0
        %v508 = vrot.slane %v502, 6
        %v510 = vadd.f32 %v299, %v508
        %v511 = vxor.u32 %v510, 2147483648
        %v512 = vmul.f32 %v511, 1.442695
        %v513 = vpow.pop %v512
        %v514 = vadd.f32 %v513, 1.0
        %v515 = vrcp.pop %v514
        %v516 = vmul.f32 1.0, %v515
        %v517 = vtanh.pop %v510
        %v519 = vrot.slane %v451, 7
        %v521 = vmul.f32 %v516, %v519
        %523 = vrot.lane.b32.xlu0 %v517, 96
        %v524 = vpop.permute.xlu0 %523
        %v526 = vmul.f32 %v516, %v524
        %528 = vrot.lane.b32.xlu0 %v526, 16
        %v529 = vpop.permute.xlu0 %528
        %v531 = vadd.f32 %v521, %v529
        %v532 = vtanh.pop %v531
        %534 = vrot.lane.b32.xlu0 %v532, 32
        %v535 = vpop.permute.xlu0 %534
        %v537 = vmul.f32 %v516, %v535
        %v538 = vpack.c.bf16 %v537, %v537
        %v540 = vrot.slane %v538, 1
        %541 = vrot.lane.b32.xlu0 %v540, 80
        %v542 = vpop.permute.xlu0 %541
        %v544 = vsel %vm260, %v542, 0
        %546 = vmatprep.subr.bf16.mxu0 0
        %547 = vmatpush1.bf16.msra.mxu0 %v310
        %548 = vmatprep.subr.bf16.mxu0 0
        %549 = vmatpush1.bf16.msra.mxu0 0
        %550 = vmatprep.subr.bf16.mxu0 0
        %551 = vmatpush1.bf16.msra.mxu0 0
        %552 = vmatprep.subr.bf16.mxu0 0
        %553 = vmatpush1.bf16.msra.mxu0 0
        %554 = vmatprep.subr.bf16.mxu0 0
        %555 = vmatpush1.bf16.msra.mxu0 0
        %556 = vmatprep.subr.bf16.mxu0 0
        %557 = vmatpush1.bf16.msra.mxu0 0
        %558 = vmatprep.subr.bf16.mxu0 0
        %559 = vmatpush1.bf16.msra.mxu0 0
        %560 = vmatprep.subr.bf16.mxu0 0
        %561 = vmatpush1.bf16.msra.mxu0 0
        %562 = vmatprep.subr.bf16.mxu0 0
        %563 = vmatpush1.bf16.msra.mxu0 0
        %564 = vmatprep.subr.bf16.mxu0 0
        %565 = vmatpush1.bf16.msra.mxu0 0
        %566 = vmatprep.subr.bf16.mxu0 0
        %567 = vmatpush1.bf16.msra.mxu0 0
        %568 = vmatprep.subr.bf16.mxu0 0
        %569 = vmatpush1.bf16.msra.mxu0 0
        %570 = vmatprep.subr.bf16.mxu0 0
        %571 = vmatpush1.bf16.msra.mxu0 0
        %572 = vmatprep.subr.bf16.mxu0 0
        %573 = vmatpush1.bf16.msra.mxu0 0
        %574 = vmatprep.subr.bf16.mxu0 0
        %575 = vmatpush1.bf16.msra.mxu0 0
        %576 = vmatprep.subr.bf16.mxu0 0
        %577 = vmatpush1.bf16.msra.mxu0 0
        %578 = vmatprep.mubr.bf16.mxu0 0
        %579 = vmatmul.mubr.bf16.gmra.mrb[0].mxu0 %v544
        %v580 = vpop.f32.mrb[0].mxu0
        %v581 = vadd.f32 0.0, %v580
        %v582 = vpop.f32.mrb[0].mxu0
        %v583 = vpop.f32.mrb[0].mxu0
        %v584 = vpop.f32.mrb[0].mxu0
        %585 = vdwg.mxu0
        %v587 = vrot.slane %v581, 5
        %v589 = vadd.f32 %v299, %v587
        %v590 = vxor.u32 %v589, 2147483648
        %v591 = vmul.f32 %v590, 1.442695
        %v592 = vpow.pop %v591
        %v593 = vadd.f32 %v592, 1.0
        %v594 = vrcp.pop %v593
        %v595 = vmul.f32 1.0, %v594
        %v596 = vtanh.pop %v589
        %v598 = vrot.slane %v531, 7
        %v600 = vmul.f32 %v595, %v598
        %602 = vrot.lane.b32.xlu0 %v596, 96
        %v603 = vpop.permute.xlu0 %602
        %v605 = vmul.f32 %v595, %v603
        %607 = vrot.lane.b32.xlu0 %v605, 16
        %v608 = vpop.permute.xlu0 %607
        %v610 = vadd.f32 %v600, %v608
        %v611 = vtanh.pop %v610
        %613 = vrot.lane.b32.xlu0 %v611, 32
        %v614 = vpop.permute.xlu0 %613
        %v616 = vmul.f32 %v595, %v614
        %v617 = vpack.c.bf16 %v616, %v616
        %v619 = vshrl.u32 %v617, 16
        %v621 = vrot.slane %v619, 1
        %622 = vrot.lane.b32.xlu0 %v621, 80
        %v623 = vpop.permute.xlu0 %622
        %v625 = vsel %vm260, %v623, 0
        %627 = vmatprep.subr.bf16.mxu0 0
        %628 = vmatpush1.bf16.msra.mxu0 %v310
        %629 = vmatprep.subr.bf16.mxu0 0
        %630 = vmatpush1.bf16.msra.mxu0 0
        %631 = vmatprep.subr.bf16.mxu0 0
        %632 = vmatpush1.bf16.msra.mxu0 0
        %633 = vmatprep.subr.bf16.mxu0 0
        %634 = vmatpush1.bf16.msra.mxu0 0
        %635 = vmatprep.subr.bf16.mxu0 0
        %636 = vmatpush1.bf16.msra.mxu0 0
        %637 = vmatprep.subr.bf16.mxu0 0
        %638 = vmatpush1.bf16.msra.mxu0 0
        %639 = vmatprep.subr.bf16.mxu0 0
        %640 = vmatpush1.bf16.msra.mxu0 0
        %641 = vmatprep.subr.bf16.mxu0 0
        %642 = vmatpush1.bf16.msra.mxu0 0
        %643 = vmatprep.subr.bf16.mxu0 0
        %644 = vmatpush1.bf16.msra.mxu0 0
        %645 = vmatprep.subr.bf16.mxu0 0
        %646 = vmatpush1.bf16.msra.mxu0 0
        %647 = vmatprep.subr.bf16.mxu0 0
        %648 = vmatpush1.bf16.msra.mxu0 0
        %649 = vmatprep.subr.bf16.mxu0 0
        %650 = vmatpush1.bf16.msra.mxu0 0
        %651 = vmatprep.subr.bf16.mxu0 0
        %652 = vmatpush1.bf16.msra.mxu0 0
        %653 = vmatprep.subr.bf16.mxu0 0
        %654 = vmatpush1.bf16.msra.mxu0 0
        %655 = vmatprep.subr.bf16.mxu0 0
        %656 = vmatpush1.bf16.msra.mxu0 0
        %657 = vmatprep.subr.bf16.mxu0 0
        %658 = vmatpush1.bf16.msra.mxu0 0
        %659 = vmatprep.mubr.bf16.mxu0 0
        %660 = vmatmul.mubr.bf16.gmra.mrb[0].mxu0 %v625
        %v661 = vpop.f32.mrb[0].mxu0
        %v662 = vadd.f32 0.0, %v661
        %v663 = vpop.f32.mrb[0].mxu0
        %v664 = vpop.f32.mrb[0].mxu0
        %v665 = vpop.f32.mrb[0].mxu0
        %666 = vdwg.mxu0
        %v668 = vrot.slane %v662, 4
        %v670 = vadd.f32 %v299, %v668
        %v671 = vxor.u32 %v670, 2147483648
        %v672 = vmul.f32 %v671, 1.442695
        %v673 = vpow.pop %v672
        %v674 = vadd.f32 %v673, 1.0
        %v675 = vrcp.pop %v674
        %v676 = vmul.f32 1.0, %v675
        %v677 = vtanh.pop %v670
        %v679 = vrot.slane %v610, 7
        %v681 = vmul.f32 %v676, %v679
        %683 = vrot.lane.b32.xlu0 %v677, 96
        %v684 = vpop.permute.xlu0 %683
        %v686 = vmul.f32 %v676, %v684
        %688 = vrot.lane.b32.xlu0 %v686, 16
        %v689 = vpop.permute.xlu0 %688
        %v691 = vadd.f32 %v681, %v689
        %v692 = vtanh.pop %v691
        %694 = vrot.lane.b32.xlu0 %v692, 32
        %v695 = vpop.permute.xlu0 %694
        %v697 = vmul.f32 %v676, %v695
        %v698 = vpack.c.bf16 %v697, %v697
        %v700 = vrot.slane %v698, 2
        %701 = vrot.lane.b32.xlu0 %v700, 80
        %v702 = vpop.permute.xlu0 %701
        %v704 = vsel %vm260, %v702, 0
        %706 = vmatprep.subr.bf16.mxu0 0
        %707 = vmatpush1.bf16.msra.mxu0 %v310
        %708 = vmatprep.subr.bf16.mxu0 0
        %709 = vmatpush1.bf16.msra.mxu0 0
        %710 = vmatprep.subr.bf16.mxu0 0
        %711 = vmatpush1.bf16.msra.mxu0 0
        %712 = vmatprep.subr.bf16.mxu0 0
        %713 = vmatpush1.bf16.msra.mxu0 0
        %714 = vmatprep.subr.bf16.mxu0 0
        %715 = vmatpush1.bf16.msra.mxu0 0
        %716 = vmatprep.subr.bf16.mxu0 0
        %717 = vmatpush1.bf16.msra.mxu0 0
        %718 = vmatprep.subr.bf16.mxu0 0
        %719 = vmatpush1.bf16.msra.mxu0 0
        %720 = vmatprep.subr.bf16.mxu0 0
        %721 = vmatpush1.bf16.msra.mxu0 0
        %722 = vmatprep.subr.bf16.mxu0 0
        %723 = vmatpush1.bf16.msra.mxu0 0
        %724 = vmatprep.subr.bf16.mxu0 0
        %725 = vmatpush1.bf16.msra.mxu0 0
        %726 = vmatprep.subr.bf16.mxu0 0
        %727 = vmatpush1.bf16.msra.mxu0 0
        %728 = vmatprep.subr.bf16.mxu0 0
        %729 = vmatpush1.bf16.msra.mxu0 0
        %730 = vmatprep.subr.bf16.mxu0 0
        %731 = vmatpush1.bf16.msra.mxu0 0
        %732 = vmatprep.subr.bf16.mxu0 0
        %733 = vmatpush1.bf16.msra.mxu0 0
        %734 = vmatprep.subr.bf16.mxu0 0
        %735 = vmatpush1.bf16.msra.mxu0 0
        %736 = vmatprep.subr.bf16.mxu0 0
        %737 = vmatpush1.bf16.msra.mxu0 0
        %738 = vmatprep.mubr.bf16.mxu0 0
        %739 = vmatmul.mubr.bf16.gmra.mrb[0].mxu0 %v704
        %v740 = vpop.f32.mrb[0].mxu0
        %v741 = vadd.f32 0.0, %v740
        %v742 = vpop.f32.mrb[0].mxu0
        %v743 = vpop.f32.mrb[0].mxu0
        %v744 = vpop.f32.mrb[0].mxu0
        %745 = vdwg.mxu0
        %v747 = vrot.slane %v741, 3
        %v749 = vadd.f32 %v299, %v747
        %v750 = vxor.u32 %v749, 2147483648
        %v751 = vmul.f32 %v750, 1.442695
        %v752 = vpow.pop %v751
        %v753 = vadd.f32 %v752, 1.0
        %v754 = vrcp.pop %v753
        %v755 = vmul.f32 1.0, %v754
        %v756 = vtanh.pop %v749
        %v758 = vrot.slane %v691, 7
        %v760 = vmul.f32 %v755, %v758
        %762 = vrot.lane.b32.xlu0 %v756, 96
        %v763 = vpop.permute.xlu0 %762
        %v765 = vmul.f32 %v755, %v763
        %767 = vrot.lane.b32.xlu0 %v765, 16
        %v768 = vpop.permute.xlu0 %767
        %v770 = vadd.f32 %v760, %v768
        %v771 = vtanh.pop %v770
        %773 = vrot.lane.b32.xlu0 %v771, 32
        %v774 = vpop.permute.xlu0 %773
        %v776 = vmul.f32 %v755, %v774
        %v777 = vpack.c.bf16 %v776, %v776
        %v779 = vshrl.u32 %v777, 16
        %v781 = vrot.slane %v779, 2
        %782 = vrot.lane.b32.xlu0 %v781, 80
        %v783 = vpop.permute.xlu0 %782
        %v785 = vsel %vm260, %v783, 0
        %787 = vmatprep.subr.bf16.mxu0 0
        %788 = vmatpush1.bf16.msra.mxu0 %v310
        %789 = vmatprep.subr.bf16.mxu0 0
        %790 = vmatpush1.bf16.msra.mxu0 0
        %791 = vmatprep.subr.bf16.mxu0 0
        %792 = vmatpush1.bf16.msra.mxu0 0
        %793 = vmatprep.subr.bf16.mxu0 0
        %794 = vmatpush1.bf16.msra.mxu0 0
        %795 = vmatprep.subr.bf16.mxu0 0
        %796 = vmatpush1.bf16.msra.mxu0 0
        %797 = vmatprep.subr.bf16.mxu0 0
        %798 = vmatpush1.bf16.msra.mxu0 0
        %799 = vmatprep.subr.bf16.mxu0 0
        %800 = vmatpush1.bf16.msra.mxu0 0
        %801 = vmatprep.subr.bf16.mxu0 0
        %802 = vmatpush1.bf16.msra.mxu0 0
        %803 = vmatprep.subr.bf16.mxu0 0
        %804 = vmatpush1.bf16.msra.mxu0 0
        %805 = vmatprep.subr.bf16.mxu0 0
        %806 = vmatpush1.bf16.msra.mxu0 0
        %807 = vmatprep.subr.bf16.mxu0 0
        %808 = vmatpush1.bf16.msra.mxu0 0
        %809 = vmatprep.subr.bf16.mxu0 0
        %810 = vmatpush1.bf16.msra.mxu0 0
        %811 = vmatprep.subr.bf16.mxu0 0
        %812 = vmatpush1.bf16.msra.mxu0 0
        %813 = vmatprep.subr.bf16.mxu0 0
        %814 = vmatpush1.bf16.msra.mxu0 0
        %815 = vmatprep.subr.bf16.mxu0 0
        %816 = vmatpush1.bf16.msra.mxu0 0
        %817 = vmatprep.subr.bf16.mxu0 0
        %818 = vmatpush1.bf16.msra.mxu0 0
        %819 = vmatprep.mubr.bf16.mxu0 0
        %820 = vmatmul.mubr.bf16.gmra.mrb[0].mxu0 %v785
        %v821 = vpop.f32.mrb[0].mxu0
        %v822 = vadd.f32 0.0, %v821
        %v823 = vpop.f32.mrb[0].mxu0
        %v824 = vpop.f32.mrb[0].mxu0
        %v825 = vpop.f32.mrb[0].mxu0
        %826 = vdwg.mxu0
        %v828 = vrot.slane %v822, 2
        %v830 = vadd.f32 %v299, %v828
        %v831 = vxor.u32 %v830, 2147483648
        %v832 = vmul.f32 %v831, 1.442695
        %v833 = vpow.pop %v832
        %v834 = vadd.f32 %v833, 1.0
        %v835 = vrcp.pop %v834
        %v836 = vmul.f32 1.0, %v835
        %v837 = vtanh.pop %v830
        %v839 = vrot.slane %v770, 7
        %v841 = vmul.f32 %v836, %v839
        %843 = vrot.lane.b32.xlu0 %v837, 96
        %v844 = vpop.permute.xlu0 %843
        %v846 = vmul.f32 %v836, %v844
        %848 = vrot.lane.b32.xlu0 %v846, 16
        %v849 = vpop.permute.xlu0 %848
        %v851 = vadd.f32 %v841, %v849
        %v852 = vtanh.pop %v851
        %854 = vrot.lane.b32.xlu0 %v852, 32
        %v855 = vpop.permute.xlu0 %854
        %v857 = vmul.f32 %v836, %v855
        %v858 = vpack.c.bf16 %v857, %v857
        %v860 = vrot.slane %v858, 3
        %861 = vrot.lane.b32.xlu0 %v860, 80
        %v862 = vpop.permute.xlu0 %861
        %v864 = vsel %vm260, %v862, 0
        %866 = vmatprep.subr.bf16.mxu0 0
        %867 = vmatpush1.bf16.msra.mxu0 %v310
        %868 = vmatprep.subr.bf16.mxu0 0
        %869 = vmatpush1.bf16.msra.mxu0 0
        %870 = vmatprep.subr.bf16.mxu0 0
        %871 = vmatpush1.bf16.msra.mxu0 0
        %872 = vmatprep.subr.bf16.mxu0 0
        %873 = vmatpush1.bf16.msra.mxu0 0
        %874 = vmatprep.subr.bf16.mxu0 0
        %875 = vmatpush1.bf16.msra.mxu0 0
        %876 = vmatprep.subr.bf16.mxu0 0
        %877 = vmatpush1.bf16.msra.mxu0 0
        %878 = vmatprep.subr.bf16.mxu0 0
        %879 = vmatpush1.bf16.msra.mxu0 0
        %880 = vmatprep.subr.bf16.mxu0 0
        %881 = vmatpush1.bf16.msra.mxu0 0
        %882 = vmatprep.subr.bf16.mxu0 0
        %883 = vmatpush1.bf16.msra.mxu0 0
        %884 = vmatprep.subr.bf16.mxu0 0
        %885 = vmatpush1.bf16.msra.mxu0 0
        %886 = vmatprep.subr.bf16.mxu0 0
        %887 = vmatpush1.bf16.msra.mxu0 0
        %888 = vmatprep.subr.bf16.mxu0 0
        %889 = vmatpush1.bf16.msra.mxu0 0
        %890 = vmatprep.subr.bf16.mxu0 0
        %891 = vmatpush1.bf16.msra.mxu0 0
        %892 = vmatprep.subr.bf16.mxu0 0
        %893 = vmatpush1.bf16.msra.mxu0 0
        %894 = vmatprep.subr.bf16.mxu0 0
        %895 = vmatpush1.bf16.msra.mxu0 0
        %896 = vmatprep.subr.bf16.mxu0 0
        %897 = vmatpush1.bf16.msra.mxu0 0
        %898 = vmatprep.mubr.bf16.mxu0 0
        %899 = vmatmul.mubr.bf16.gmra.mrb[0].mxu0 %v864
        %v900 = vpop.f32.mrb[0].mxu0
        %v901 = vadd.f32 0.0, %v900
        %v902 = vpop.f32.mrb[0].mxu0
        %v903 = vpop.f32.mrb[0].mxu0
        %v904 = vpop.f32.mrb[0].mxu0
        %905 = vdwg.mxu0
        %v907 = vrot.slane %v901, 1
        %v909 = vadd.f32 %v299, %v907
        %v910 = vxor.u32 %v909, 2147483648
        %v911 = vmul.f32 %v910, 1.442695
        %v912 = vpow.pop %v911
        %v913 = vadd.f32 %v912, 1.0
        %v914 = vrcp.pop %v913
        %v915 = vmul.f32 1.0, %v914
        %v916 = vtanh.pop %v909
        %v918 = vrot.slane %v851, 7
        %v920 = vmul.f32 %v915, %v918
        %922 = vrot.lane.b32.xlu0 %v916, 96
        %v923 = vpop.permute.xlu0 %922
        %v925 = vmul.f32 %v915, %v923
        %927 = vrot.lane.b32.xlu0 %v925, 16
        %v928 = vpop.permute.xlu0 %927
        %v930 = vadd.f32 %v920, %v928
        %v931 = vtanh.pop %v930
        %933 = vrot.lane.b32.xlu0 %v931, 32
        %v934 = vpop.permute.xlu0 %933
        %v936 = vmul.f32 %v915, %v934
        %vm937 = vcmask 1040384
        %v938 = vsel %vm937, %v379, %v457
        %vm939 = vcmask 1041408
        %v940 = vsel %vm939, %v938, %v537
        %vm941 = vcmask 1042432
        %v942 = vsel %vm941, %v940, %v616
        %vm943 = vcmask 1043456
        %v944 = vsel %vm943, %v942, %v697
        %vm945 = vcmask 1044480
        %v946 = vsel %vm945, %v944, %v776
        %vm947 = vcmask 1045504
        %v948 = vsel %vm947, %v946, %v857
        %vm949 = vcmask 1046528
        %v950 = vsel %vm949, %v948, %v936
        %v951 = vmax.f32 %v950, 0.0
        %953 = vrot.lane.b32.xlu0 %v951, 80
        %v954 = vpop.permute.xlu0 %953
        %956 = vst.msk [vmem:[%s241] sm:$0xff] %vm260, %v954
        %v957 = vmax.f32 %v243, 0.0
        %959 = vrot.lane.b32.xlu0 %v957, 16
        %v960 = vpop.permute.xlu0 %959
        %vm962 = vcmask 261248
        %963 = vst.msk [vmem:[%s241] sm:$0xff] %vm962, %v960
        %s964 = sand.u32 %s119, 1
        %s965 = scalar_lea.sflag [#allocation4], %s964
        %s966 = sand.u32 %s119, 1
        %s967 = smul.addr %s966, 8
        %s968 = scalar_lea.vmem [#allocation8], %s967
        // Predicated region
        $region49: #{tpu_custom_call.1} parent=35 // pred_check
          %p969 = pneg %p129
        $region50: #{tpu_custom_call.1} parent=35 // pred_check_branch
          %971 = sbr.rel (%p969) target = $region52
        $region51: #{tpu_custom_call.1} parent=35 // pred_region
          %s973 = ssub.s32 128, 128
          %974 = vsyncadd %s965, %s973
          %s975 = smul.addr %s22, 128
          %s976 = scalar_lea.hbm %s4, %s975
          %s978 = sshll.u32 %s968, 4
          %s979 = int_to_ptr.vmem [resolvable:$true] %s978
          %981 = dma.vmem_to_hbm [thread:$0]  %s979, 128, %s976, %s965
        $region52: #{tpu_custom_call.1} parent=35 // pred_fallthru
          _
      $region36: #{tpu_custom_call.1} parent=5 // pred_fallthru
        _
      %p982 = scmp.le.s32.totalorder 2, %s17
      // Predicated region
      $region53: #{tpu_custom_call.1} parent=5 // pred_check
        %p983 = pneg %p982
      $region54: #{tpu_custom_call.1} parent=5 // pred_check_branch
        %985 = sbr.rel (%p983) target = $region56
      $region55: #{tpu_custom_call.1} parent=5 // pred_region
        %s986 = ssub.s32 %s17, 2
        // Predicated region
        $region57: #{tpu_custom_call.1} parent=55 // pred_check
          %p987 = pneg %p135
        $region58: #{tpu_custom_call.1} parent=55 // pred_check_branch
          %989 = sbr.rel (%p987) target = $region60
        $region59: #{tpu_custom_call.1} parent=55 // pred_region
          %s990 = sand.u32 %s120, 1
          %s991 = scalar_lea.sflag [#allocation4], %s990
          %s992 = sand.u32 %s120, 1
          %s993 = smul.addr %s992, 8
          %s994 = scalar_lea.vmem [#allocation8], %s993
          %995 = dma.done %s991, 128
        $region60: #{tpu_custom_call.1} parent=55 // pred_fallthru
          _
      $region56: #{tpu_custom_call.1} parent=5 // pred_fallthru
        _
    $region6: #{tpu_custom_call.1} parent=1 // loop_footer
      %s21 = sadd.s32 1, %s17
    $region7: #{tpu_custom_call.1} parent=1 // loop_footer_branch
      %16 = sbr.rel target = $region3
    $region8: #{tpu_custom_call.1} parent=1 // loop_exit
      _
    %996 = vsyncpa [#allocation3], 1
    %s997 = scalar_lea.sflag [#allocation3], 1
    %998 = vsyncpa %s997, 1
    %999 = vsyncpa [#allocation6], 1
    %1000 = vsyncpa [#allocation4], 1
    %s1001 = scalar_lea.sflag [#allocation4], 1
    %1002 = vsyncpa %s1001, 1

</llo_original>
